<compile_context>
chip_gen: v7x
topology: tpu7x:2x2x1
jax: 0.10.0
libtpu: 0.0.40
codegen_flags: <defaults>
</compile_context>

<pallas_src>
import functools
import math

import jax
import jax.numpy as jnp
from jax.experimental import pallas as pl
from jax.experimental.pallas import tpu as pltpu

LANE = 128
SUBLANE = 8


def _round_up(x, m):
    return ((x + m - 1) // m) * m


# ----------------------------------------------------------------------------
# Fused Pallas kernel: all layers, one batch tile per grid step
# ----------------------------------------------------------------------------
def dmsp_fused_kernel(x_ref, shuf_ref,
                      w1_ref, b1_ref, w2_ref, b2_ref,
                      lng_ref, lnb_ref, wc_ref, bc_ref,
                      logit_ref):
    TB, S, H = x_ref.shape
    L = w1_ref.shape[0]
    rows = TB * S

    # Activations arrive as bf16 (half the DMA bytes); all layernorm / residual /
    # softmax math stays f32 (v5e has no bf16 VPU/EUP).
    res = x_ref[...].astype(jnp.float32).reshape(rows, H)
    shuf = shuf_ref[...].astype(jnp.float32).reshape(rows, H)

    def layer_norm(v, gamma, beta):
        mu = jnp.mean(v, axis=-1, keepdims=True)
        var = jnp.mean((v - mu) * (v - mu), axis=-1, keepdims=True)
        # NOTE: zero-padded batch rows hit var=0 -> rsqrt(1e-5); finite, sliced off.
        return (v - mu) * jax.lax.rsqrt(var + 1e-5) * gamma + beta

    # Static unroll over layers: stacked weights stay resident in VMEM and the
    # inter-layer `res` never leaves VMEM (no HBM writeback between layers).
    for l in range(L):
        residual = res
        gamma = lng_ref[l]                 # (1, H)
        beta = lnb_ref[l]                  # (1, H)

        # ---- MLP (Linear -> GELU -> Linear): bf16 MXU operands, f32 accumulation.
        # TODO(synk): MultiLayerPerceptron is undefined in the reference; assumed
        #             Linear(H, F) -> GELU -> Linear(F, H) with no internal dropout.
        h = jnp.dot(res.astype(jnp.bfloat16), w1_ref[l],
                    preferred_element_type=jnp.float32) + b1_ref[l]
        # TODO(synk): PyTorch nn.GELU default is the exact erf GELU; tanh approx used.
        h = jax.nn.gelu(h, approximate=True)
        mlp = jnp.dot(h.astype(jnp.bfloat16), w2_ref[l],
                      preferred_element_type=jnp.float32) + b2_ref[l]   # (rows, H)

        # The reference's shuffle loop overwrites `res` each iteration with
        # loop-invariant mlp/residual, so only the LAST shuffle tensor matters.
        t = layer_norm(mlp + residual - shuf, gamma, beta)
        res = layer_norm(t + residual, gamma, beta)                     # (rows, H)

        # ---- classifier head: mean over seq, Linear (bf16 MXU), LogSoftmax (f32).
        pooled = jnp.mean(res.reshape(TB, S, H), axis=1)                # (TB, H)
        logits = jnp.dot(pooled.astype(jnp.bfloat16), wc_ref[l],
                         preferred_element_type=jnp.float32) + bc_ref[l]  # (TB, Cp)
        m = jnp.max(logits, axis=-1, keepdims=True)
        z = logits - m
        lse = jnp.log(jnp.sum(jnp.exp(z), axis=-1, keepdims=True))
        logit_ref[l] = (z - lse).astype(logit_ref.dtype)   # lane-dense (TB, 128-pad)


@functools.partial(jax.jit, static_argnums=(3, 4))
def dmsp_forward(x, shuf, stacked, tile_b, vmem_limit):
    """All DynamicSemanticPerceptron layers in one batch-tiled pallas_call.

    x, shuf: (B_pad, S, H) bf16 with B_pad a multiple of tile_b.
    Returns per-layer log-probs of shape (L, B_pad, C_pad).
    """
    B_pad, S, H = x.shape
    L, _, F = stacked["w1"].shape
    C_pad = stacked["wc"].shape[-1]
    n_tiles = B_pad // tile_b

    tile3 = lambda i: (i, 0, 0)
    const3 = lambda i: (0, 0, 0)   # stacked weights: constant block -> VMEM-resident

    return pl.pallas_call(
        dmsp_fused_kernel,
        out_shape=jax.ShapeDtypeStruct((L, B_pad, C_pad), jnp.float32),
        grid=(n_tiles,),
        in_specs=[
            pl.BlockSpec((tile_b, S, H), tile3),      # x  (bf16 activations)
            pl.BlockSpec((tile_b, S, H), tile3),      # last shuffle tensor (bf16)
            pl.BlockSpec((L, H, F), const3),          # stacked w1 (bf16)
            pl.BlockSpec((L, 1, F), const3),          # stacked b1
            pl.BlockSpec((L, F, H), const3),          # stacked w2 (bf16)
            pl.BlockSpec((L, 1, H), const3),          # stacked b2
            pl.BlockSpec((L, 1, H), const3),          # layernorm gamma
            pl.BlockSpec((L, 1, H), const3),          # layernorm beta
            pl.BlockSpec((L, H, C_pad), const3),      # stacked wc (bf16, 128-padded)
            pl.BlockSpec((L, 1, C_pad), const3),      # stacked bc (pad = -1e30)
        ],
        out_specs=pl.BlockSpec((L, tile_b, C_pad), lambda i: (0, i, 0)),
        compiler_params=pltpu.CompilerParams(
            dimension_semantics=("parallel",),
            vmem_limit_bytes=vmem_limit),
    )(x, shuf, stacked["w1"], stacked["b1"], stacked["w2"], stacked["b2"],
      stacked["ln_g"], stacked["ln_b"], stacked["wc"], stacked["bc"])


# ----------------------------------------------------------------------------
# Plain-JAX glue (recorder / accuracy / params)
# ----------------------------------------------------------------------------
def recorder(accuracies, epsilon):
    # Faithful to the PyTorch reference (including its exp(mu*acc)/sum(exp(mu))
    # normalisation and the -inf branch).
    acc = jnp.asarray(accuracies, dtype=jnp.float32)          # (L,)
    mask = acc <= epsilon
    n_sl = jnp.sum(mask.astype(jnp.int32))
    n_gl = acc.shape[0] - n_sl
    any_le = jnp.any(mask)
    cond_gl = n_gl >= n_sl + 1
    flag = jnp.logical_and(any_le, cond_gl)
    ones = jnp.ones_like(acc)
    mu_gl = jnp.where(mask, -jnp.inf, ones)
    mu_sl = jnp.where(mask, -1.0, ones)
    mu = jnp.where(any_le, jnp.where(cond_gl, mu_gl, mu_sl), ones)
    beta = jnp.exp(mu * acc) / jnp.sum(jnp.exp(mu))
    weight_accuracy = beta * acc
    return weight_accuracy, beta, flag


def init_layer_params(key, hidden_dim, ffn_dim, num_classes, num_classes_padded):
    ks = jax.random.split(key, 6)

    def uni(k, shape, fan_in):
        bound = 1.0 / math.sqrt(fan_in)
        return jax.random.uniform(k, shape, jnp.float32, -bound, bound)

    wc = uni(ks[4], (hidden_dim, num_classes), hidden_dim)
    bc = uni(ks[5], (1, num_classes), hidden_dim)
    pad = num_classes_padded - num_classes
    wc_p = jnp.pad(wc, ((0, 0), (0, pad)))
    bc_p = jnp.pad(bc, ((0, 0), (0, pad)), constant_values=-1e30)

    return {
        # matmul weights in bf16 (MXU-native, halves weight DMA);
        # biases and layernorm params stay f32.
        "w1": uni(ks[0], (hidden_dim, ffn_dim), hidden_dim).astype(jnp.bfloat16),
        "b1": uni(ks[1], (1, ffn_dim), hidden_dim),
        "w2": uni(ks[2], (ffn_dim, hidden_dim), ffn_dim).astype(jnp.bfloat16),
        "b2": uni(ks[3], (1, hidden_dim), ffn_dim),
        "ln_g": jnp.ones((1, hidden_dim), jnp.float32),
        "ln_b": jnp.zeros((1, hidden_dim), jnp.float32),
        "wc": wc_p.astype(jnp.bfloat16),
        "bc": bc_p,
    }


def _detect_tpu():
    """Per-generation VMEM cap (~3/4 of physical) and megacore tile minimum."""
    vmem_cap = 48 << 20        # conservative fallback (safe on v7x's 64 MiB)
    min_tiles = 1
    try:
        cap = int(pltpu.get_tpu_info().vmem_capacity_bytes)
        vmem_cap = max(32 << 20, min((cap * 3) // 4, 112 << 20))
    except Exception:
        pass
    try:
        kind = jax.devices()[0].device_kind.lower()
        if "v7" in kind or "7x" in kind:
            min_tiles = 2      # 2 TensorCores/chip: keep >= 2 "parallel" grid steps
    except Exception:
        pass
    return vmem_cap, min_tiles


class DynamicMultiSemanticPerceptron:
    def __init__(self, key, vocab_size, hidden_dim, ffn_dim, num_layers,
                 num_classes, epsilon, patience):
        kemb, klayers = jax.random.split(key)
        self.hidden_dim = hidden_dim
        self.ffn_dim = ffn_dim
        self.num_classes = num_classes
        self.num_classes_padded = _round_up(num_classes, LANE)
        self.embedding = jax.random.normal(
            kemb, (vocab_size, hidden_dim), jnp.float32)
        self.layers = [
            init_layer_params(k, hidden_dim, ffn_dim, num_classes,
                              self.num_classes_padded)
            for k in jax.random.split(klayers, num_layers)
        ]
        self.epsilon = float(epsilon)
        self.patience = int(patience)
        self.patience_counter = 0
        self.vmem_cap, self.min_tiles = _detect_tpu()
        self._stacked_cache = None
        self._stacked_L = -1

    # -- tiling / VMEM budgeting -------------------------------------------
    def _choose_tiling(self, batch, seq):
        # ~1024 rows (B*S) per grid step (512-2048 is the measured sweet spot),
        # sublane-aligned; on v7x keep >= 2 grid steps so the "parallel" batch
        # axis shards across both TensorCores.
        tile = max(SUBLANE, (1024 // max(seq, 1)) // SUBLANE * SUBLANE)
        if self.min_tiles > 1:
            per_core = _round_up((batch + self.min_tiles - 1) // self.min_tiles,
                                 SUBLANE)
            tile = min(tile, per_core)
            b_pad = max(_round_up(batch, tile), self.min_tiles * tile)
        else:
            tile = min(tile, _round_up(batch, SUBLANE))
            b_pad = _round_up(batch, tile)
        return int(tile), int(b_pad)

    def _vmem_limit(self, tile_b, seq):
        H, F = self.hidden_dim, self.ffn_dim
        L, Cp = len(self.layers), self.num_classes_padded
        rows = tile_b * seq
        act_in = 2 * (2 * rows * H * 2)                      # x + shuf bf16, 2 buffers
        out = 2 * (L * tile_b * Cp * 4)                      # logits f32, 2 buffers
        weights = 2 * (L * (H * F + F * H + H * Cp) * 2      # bf16 weights, 2 buffers
                       + L * (F + 3 * H + Cp) * 4)           # f32 biases / LN params
        work = rows * (2 * F + 8 * H) * 4 + L * tile_b * Cp * 4   # f32 intermediates
        est = act_in + out + weights + work
        return int(min(self.vmem_cap, max(32 << 20, 2 * est)))

    def _stacked_params(self):
        L = len(self.layers)
        if self._stacked_cache is not None and self._stacked_L == L:
            return self._stacked_cache
        stacked = {k: jnp.stack([p[k] for p in self.layers], axis=0)
                   for k in self.layers[0]}
        self._stacked_cache, self._stacked_L = stacked, L
        return stacked

    # -- forward -------------------------------------------------------------
    def forward(self, token_ids, target, shuffle_times):
        B, S = token_ids.shape
        C = self.num_classes
        L = len(self.layers)
        tile_b, B_pad = self._choose_tiling(B, S)
        pad_b = B_pad - B
        stacked = self._stacked_params()

        # Embedding lookup + deterministic "token shuffle", hoisted out of the
        # layer loop (layer-invariant); only the LAST shuffle tensor survives the
        # reference's inner loop so only it is built.  Carried as bf16 (halves DMA).
        # TODO(synk): token_transform is not defined in the reference; assumed a
        #             deterministic sequence roll (shift = shuffle_times) followed
        #             by an embedding lookup.
        res0 = self.embedding[token_ids].astype(jnp.bfloat16)                # (B,S,H)
        shuf = self.embedding[
            jnp.roll(token_ids, shift=shuffle_times, axis=1)].astype(jnp.bfloat16)
        res0 = jnp.pad(res0, ((0, pad_b), (0, 0), (0, 0)))
        shuf = jnp.pad(shuf, ((0, pad_b), (0, 0), (0, 0)))

        vmem_limit = self._vmem_limit(tile_b, S)
        logit_all = dmsp_forward(res0, shuf, stacked, tile_b, vmem_limit)
        logit_all = logit_all[:, :B, :C]           # strip batch / class padding

        # One lazy per-layer argmax / accuracy pass (no host sync in a loop).
        predict = jnp.argmax(logit_all, axis=-1)                       # (L, B)
        acc = jnp.sum(predict == target[None, :], axis=-1) / (B + 1e-9)  # (L,)

        weight_accuracy, beta, flag = recorder(acc, self.epsilon)
        logits = [logit_all[l] for l in range(L)]

        # Single host sync per forward (stateful patience / depth-pruning logic).
        if bool(flag):
            self.patience_counter += 1
        if self.patience_counter == self.patience:
            # TODO(synk): stateful depth-pruning path (pops a layer; `del beta[-1]`
            #             on a tensor is invalid in the original); emulated minimally.
            self.layers.pop(-1)
            self._stacked_cache = None
            self.patience_counter = 0
            weight_accuracy = weight_accuracy[:-2]
            logits.pop(-1)
            beta = beta[:-1]
        return weight_accuracy, logits[-1] * beta[-1]


# ----------------------------------------------------------------------------
# Demo
# ----------------------------------------------------------------------------
if __name__ == "__main__":
    VOCAB = 50
    HIDDEN = 32
    FFN = 64
    NUM_LAYERS = 2
    NUM_CLASSES = 4
    EPSILON = 0.5
    PATIENCE = 10
    SHUFFLE_TIMES = 3
    B, S = 2, 8

    key = jax.random.PRNGKey(0)
    kmodel, ktok, ktgt = jax.random.split(key, 3)

    model = DynamicMultiSemanticPerceptron(
        kmodel, VOCAB, HIDDEN, FFN, NUM_LAYERS, NUM_CLASSES, EPSILON, PATIENCE)

    token_ids = jax.random.randint(ktok, (B, S), 0, VOCAB, dtype=jnp.int32)
    target = jax.random.randint(ktgt, (B,), 0, NUM_CLASSES, dtype=jnp.int32)

    weight_accuracy, scaled_logits = model.forward(token_ids, target,
                                                   SHUFFLE_TIMES)
    jax.block_until_ready(weight_accuracy)
    jax.block_until_ready(scaled_logits)
    print("KERNEL_OK")
</pallas_src>

<mosaic_0001>
module attributes {stable_mosaic.version = 11 : i64} {
  func.func @dmsp_fused_kernel(%arg0: i32, %arg1: memref<8x8x32xbf16, #tpu.memory_space<vmem>>, %arg2: memref<8x8x32xbf16, #tpu.memory_space<vmem>>, %arg3: memref<2x32x64xbf16, #tpu.memory_space<vmem>>, %arg4: memref<2x1x64xf32, #tpu.memory_space<vmem>>, %arg5: memref<2x64x32xbf16, #tpu.memory_space<vmem>>, %arg6: memref<2x1x32xf32, #tpu.memory_space<vmem>>, %arg7: memref<2x1x32xf32, #tpu.memory_space<vmem>>, %arg8: memref<2x1x32xf32, #tpu.memory_space<vmem>>, %arg9: memref<2x32x128xbf16, #tpu.memory_space<vmem>>, %arg10: memref<2x1x128xf32, #tpu.memory_space<vmem>>, %arg11: memref<2x8x128xf32, #tpu.memory_space<vmem>>) attributes {dimension_semantics = [#tpu.dimension_semantics<parallel>], iteration_bounds = array<i64: 1>, scalar_prefetch = 0 : i64, scratch_operands = 0 : i64, tpu.core_type = #tpu.core_type<tc>, window_params = [{transform_indices = @transform_0, window_bounds = array<i64: 8, 8, 32>}, {transform_indices = @transform_1, window_bounds = array<i64: 8, 8, 32>}, {pipeline_mode = #tpu.pipeline_mode<synchronous>, transform_indices = @transform_2, window_bounds = array<i64: 2, 32, 64>}, {pipeline_mode = #tpu.pipeline_mode<synchronous>, transform_indices = @transform_3, window_bounds = array<i64: 2, 1, 64>}, {pipeline_mode = #tpu.pipeline_mode<synchronous>, transform_indices = @transform_4, window_bounds = array<i64: 2, 64, 32>}, {pipeline_mode = #tpu.pipeline_mode<synchronous>, transform_indices = @transform_5, window_bounds = array<i64: 2, 1, 32>}, {pipeline_mode = #tpu.pipeline_mode<synchronous>, transform_indices = @transform_6, window_bounds = array<i64: 2, 1, 32>}, {pipeline_mode = #tpu.pipeline_mode<synchronous>, transform_indices = @transform_7, window_bounds = array<i64: 2, 1, 32>}, {pipeline_mode = #tpu.pipeline_mode<synchronous>, transform_indices = @transform_8, window_bounds = array<i64: 2, 32, 128>}, {pipeline_mode = #tpu.pipeline_mode<synchronous>, transform_indices = @transform_9, window_bounds = array<i64: 2, 1, 128>}, {transform_indices = @transform_10, window_bounds = array<i64: 2, 8, 128>}]} {
    %c0 = arith.constant 0 : index
    %c0_0 = arith.constant 0 : index
    %c0_1 = arith.constant 0 : index
    %0 = vector.load %arg1[%c0, %c0_0, %c0_1] : memref<8x8x32xbf16, #tpu.memory_space<vmem>>, vector<8x8x32xbf16>
    %1 = arith.extf %0 : vector<8x8x32xbf16> to vector<8x8x32xf32>
    %2 = vector.shape_cast %1 : vector<8x8x32xf32> to vector<64x32xf32>
    %c0_2 = arith.constant 0 : index
    %c0_3 = arith.constant 0 : index
    %c0_4 = arith.constant 0 : index
    %3 = vector.load %arg2[%c0_2, %c0_3, %c0_4] : memref<8x8x32xbf16, #tpu.memory_space<vmem>>, vector<8x8x32xbf16>
    %4 = arith.extf %3 : vector<8x8x32xbf16> to vector<8x8x32xf32>
    %5 = vector.shape_cast %4 : vector<8x8x32xf32> to vector<64x32xf32>
    %c0_5 = arith.constant 0 : index
    %c0_6 = arith.constant 0 : index
    %c0_7 = arith.constant 0 : index
    %6 = vector.load %arg7[%c0_5, %c0_6, %c0_7] : memref<2x1x32xf32, #tpu.memory_space<vmem>>, vector<1x1x32xf32>
    %7 = vector.shape_cast %6 : vector<1x1x32xf32> to vector<1x32xf32>
    %c0_8 = arith.constant 0 : index
    %c0_9 = arith.constant 0 : index
    %c0_10 = arith.constant 0 : index
    %8 = vector.load %arg8[%c0_8, %c0_9, %c0_10] : memref<2x1x32xf32, #tpu.memory_space<vmem>>, vector<1x1x32xf32>
    %9 = vector.shape_cast %8 : vector<1x1x32xf32> to vector<1x32xf32>
    %10 = arith.truncf %2 : vector<64x32xf32> to vector<64x32xbf16>
    %c0_11 = arith.constant 0 : index
    %c0_12 = arith.constant 0 : index
    %c0_13 = arith.constant 0 : index
    %11 = vector.load %arg3[%c0_11, %c0_12, %c0_13] : memref<2x32x64xbf16, #tpu.memory_space<vmem>>, vector<1x32x64xbf16>
    %12 = vector.shape_cast %11 : vector<1x32x64xbf16> to vector<32x64xbf16>
    %cst = arith.constant dense<0.000000e+00> : vector<64x64xf32>
    %13 = tpu.matmul %10, %12, %cst {dimension_numbers = #tpu.dot_dimension_numbers<[1], [0], [0], [1], [0, 0, 1, 1], [], []>} : vector<64x32xbf16>, vector<32x64xbf16>, vector<64x64xf32> -> vector<64x64xf32>
    %c0_14 = arith.constant 0 : index
    %c0_15 = arith.constant 0 : index
    %c0_16 = arith.constant 0 : index
    %14 = vector.load %arg4[%c0_14, %c0_15, %c0_16] : memref<2x1x64xf32, #tpu.memory_space<vmem>>, vector<1x1x64xf32>
    %15 = vector.shape_cast %14 : vector<1x1x64xf32> to vector<1x64xf32>
    %16 = vector.broadcast %15 : vector<1x64xf32> to vector<64x64xf32>
    %17 = arith.addf %13, %16 : vector<64x64xf32>
    %18 = arith.mulf %17, %17 : vector<64x64xf32>
    %19 = arith.mulf %17, %18 : vector<64x64xf32>
    %cst_17 = arith.constant 4.471500e-02 : f32
    %20 = vector.broadcast %cst_17 : f32 to vector<64x64xf32>
    %21 = arith.mulf %20, %19 : vector<64x64xf32>
    %22 = arith.addf %17, %21 : vector<64x64xf32>
    %cst_18 = arith.constant 0.797884583 : f32
    %23 = vector.broadcast %cst_18 : f32 to vector<64x64xf32>
    %24 = arith.mulf %23, %22 : vector<64x64xf32>
    %25 = math.tanh %24 : vector<64x64xf32>
    %cst_19 = arith.constant 1.000000e+00 : f32
    %26 = vector.broadcast %cst_19 : f32 to vector<64x64xf32>
    %27 = arith.addf %26, %25 : vector<64x64xf32>
    %cst_20 = arith.constant 5.000000e-01 : f32
    %28 = vector.broadcast %cst_20 : f32 to vector<64x64xf32>
    %29 = arith.mulf %28, %27 : vector<64x64xf32>
    %30 = arith.mulf %17, %29 : vector<64x64xf32>
    %31 = arith.truncf %30 : vector<64x64xf32> to vector<64x64xbf16>
    %c0_21 = arith.constant 0 : index
    %c0_22 = arith.constant 0 : index
    %c0_23 = arith.constant 0 : index
    %32 = vector.load %arg5[%c0_21, %c0_22, %c0_23] : memref<2x64x32xbf16, #tpu.memory_space<vmem>>, vector<1x64x32xbf16>
    %33 = vector.shape_cast %32 : vector<1x64x32xbf16> to vector<64x32xbf16>
    %cst_24 = arith.constant dense<0.000000e+00> : vector<64x32xf32>
    %34 = tpu.matmul %31, %33, %cst_24 {dimension_numbers = #tpu.dot_dimension_numbers<[1], [0], [0], [1], [0, 0, 1, 1], [], []>} : vector<64x64xbf16>, vector<64x32xbf16>, vector<64x32xf32> -> vector<64x32xf32>
    %c0_25 = arith.constant 0 : index
    %c0_26 = arith.constant 0 : index
    %c0_27 = arith.constant 0 : index
    %35 = vector.load %arg6[%c0_25, %c0_26, %c0_27] : memref<2x1x32xf32, #tpu.memory_space<vmem>>, vector<1x1x32xf32>
    %36 = vector.shape_cast %35 : vector<1x1x32xf32> to vector<1x32xf32>
    %37 = vector.broadcast %36 : vector<1x32xf32> to vector<64x32xf32>
    %38 = arith.addf %34, %37 : vector<64x32xf32>
    %39 = arith.addf %38, %2 : vector<64x32xf32>
    %40 = arith.subf %39, %5 : vector<64x32xf32>
    %cst_28 = arith.constant dense<0.000000e+00> : vector<64xf32>
    %41 = vector.multi_reduction <add>, %40, %cst_28 [1] : vector<64x32xf32> to vector<64xf32>
    %42 = vector.shape_cast %41 : vector<64xf32> to vector<64x1xf32>
    %cst_29 = arith.constant 3.200000e+01 : f32
    %43 = vector.broadcast %cst_29 : f32 to vector<64x1xf32>
    %44 = arith.divf %42, %43 : vector<64x1xf32>
    %45 = vector.broadcast %44 : vector<64x1xf32> to vector<64x32xf32>
    %46 = arith.subf %40, %45 : vector<64x32xf32>
    %47 = vector.broadcast %44 : vector<64x1xf32> to vector<64x32xf32>
    %48 = arith.subf %40, %47 : vector<64x32xf32>
    %49 = arith.mulf %46, %48 : vector<64x32xf32>
    %cst_30 = arith.constant dense<0.000000e+00> : vector<64xf32>
    %50 = vector.multi_reduction <add>, %49, %cst_30 [1] : vector<64x32xf32> to vector<64xf32>
    %51 = vector.shape_cast %50 : vector<64xf32> to vector<64x1xf32>
    %cst_31 = arith.constant 3.200000e+01 : f32
    %52 = vector.broadcast %cst_31 : f32 to vector<64x1xf32>
    %53 = arith.divf %51, %52 : vector<64x1xf32>
    %54 = vector.broadcast %44 : vector<64x1xf32> to vector<64x32xf32>
    %55 = arith.subf %40, %54 : vector<64x32xf32>
    %cst_32 = arith.constant 9.99999974E-6 : f32
    %56 = vector.broadcast %cst_32 : f32 to vector<64x1xf32>
    %57 = arith.addf %53, %56 : vector<64x1xf32>
    %58 = math.rsqrt %57 : vector<64x1xf32>
    %59 = vector.broadcast %58 : vector<64x1xf32> to vector<64x32xf32>
    %60 = arith.mulf %55, %59 : vector<64x32xf32>
    %61 = vector.broadcast %7 : vector<1x32xf32> to vector<64x32xf32>
    %62 = arith.mulf %60, %61 : vector<64x32xf32>
    %63 = vector.broadcast %9 : vector<1x32xf32> to vector<64x32xf32>
    %64 = arith.addf %62, %63 : vector<64x32xf32>
    %65 = arith.addf %64, %2 : vector<64x32xf32>
    %cst_33 = arith.constant dense<0.000000e+00> : vector<64xf32>
    %66 = vector.multi_reduction <add>, %65, %cst_33 [1] : vector<64x32xf32> to vector<64xf32>
    %67 = vector.shape_cast %66 : vector<64xf32> to vector<64x1xf32>
    %cst_34 = arith.constant 3.200000e+01 : f32
    %68 = vector.broadcast %cst_34 : f32 to vector<64x1xf32>
    %69 = arith.divf %67, %68 : vector<64x1xf32>
    %70 = vector.broadcast %69 : vector<64x1xf32> to vector<64x32xf32>
    %71 = arith.subf %65, %70 : vector<64x32xf32>
    %72 = vector.broadcast %69 : vector<64x1xf32> to vector<64x32xf32>
    %73 = arith.subf %65, %72 : vector<64x32xf32>
    %74 = arith.mulf %71, %73 : vector<64x32xf32>
    %cst_35 = arith.constant dense<0.000000e+00> : vector<64xf32>
    %75 = vector.multi_reduction <add>, %74, %cst_35 [1] : vector<64x32xf32> to vector<64xf32>
    %76 = vector.shape_cast %75 : vector<64xf32> to vector<64x1xf32>
    %cst_36 = arith.constant 3.200000e+01 : f32
    %77 = vector.broadcast %cst_36 : f32 to vector<64x1xf32>
    %78 = arith.divf %76, %77 : vector<64x1xf32>
    %79 = vector.broadcast %69 : vector<64x1xf32> to vector<64x32xf32>
    %80 = arith.subf %65, %79 : vector<64x32xf32>
    %cst_37 = arith.constant 9.99999974E-6 : f32
    %81 = vector.broadcast %cst_37 : f32 to vector<64x1xf32>
    %82 = arith.addf %78, %81 : vector<64x1xf32>
    %83 = math.rsqrt %82 : vector<64x1xf32>
    %84 = vector.broadcast %83 : vector<64x1xf32> to vector<64x32xf32>
    %85 = arith.mulf %80, %84 : vector<64x32xf32>
    %86 = vector.broadcast %7 : vector<1x32xf32> to vector<64x32xf32>
    %87 = arith.mulf %85, %86 : vector<64x32xf32>
    %88 = vector.broadcast %9 : vector<1x32xf32> to vector<64x32xf32>
    %89 = arith.addf %87, %88 : vector<64x32xf32>
    %90 = vector.shape_cast %89 : vector<64x32xf32> to vector<8x8x32xf32>
    %cst_38 = arith.constant dense<0.000000e+00> : vector<8x32xf32>
    %91 = vector.multi_reduction <add>, %90, %cst_38 [1] : vector<8x8x32xf32> to vector<8x32xf32>
    %cst_39 = arith.constant 8.000000e+00 : f32
    %92 = vector.broadcast %cst_39 : f32 to vector<8x32xf32>
    %93 = arith.divf %91, %92 : vector<8x32xf32>
    %94 = arith.truncf %93 : vector<8x32xf32> to vector<8x32xbf16>
    %c0_40 = arith.constant 0 : index
    %c0_41 = arith.constant 0 : index
    %c0_42 = arith.constant 0 : index
    %95 = vector.load %arg9[%c0_40, %c0_41, %c0_42] : memref<2x32x128xbf16, #tpu.memory_space<vmem>>, vector<1x32x128xbf16>
    %96 = vector.shape_cast %95 : vector<1x32x128xbf16> to vector<32x128xbf16>
    %cst_43 = arith.constant dense<0.000000e+00> : vector<8x128xf32>
    %97 = tpu.matmul %94, %96, %cst_43 {dimension_numbers = #tpu.dot_dimension_numbers<[1], [0], [0], [1], [0, 0, 1, 1], [], []>} : vector<8x32xbf16>, vector<32x128xbf16>, vector<8x128xf32> -> vector<8x128xf32>
    %c0_44 = arith.constant 0 : index
    %c0_45 = arith.constant 0 : index
    %c0_46 = arith.constant 0 : index
    %98 = vector.load %arg10[%c0_44, %c0_45, %c0_46] : memref<2x1x128xf32, #tpu.memory_space<vmem>>, vector<1x1x128xf32>
    %99 = vector.shape_cast %98 : vector<1x1x128xf32> to vector<1x128xf32>
    %100 = vector.broadcast %99 : vector<1x128xf32> to vector<8x128xf32>
    %101 = arith.addf %97, %100 : vector<8x128xf32>
    %cst_47 = arith.constant dense<0xFF800000> : vector<8xf32>
    %102 = vector.multi_reduction <maximumf>, %101, %cst_47 [1] : vector<8x128xf32> to vector<8xf32>
    %103 = vector.shape_cast %102 : vector<8xf32> to vector<8x1xf32>
    %104 = vector.broadcast %103 : vector<8x1xf32> to vector<8x128xf32>
    %105 = arith.subf %101, %104 : vector<8x128xf32>
    %106 = math.exp %105 : vector<8x128xf32>
    %cst_48 = arith.constant dense<0.000000e+00> : vector<8xf32>
    %107 = vector.multi_reduction <add>, %106, %cst_48 [1] : vector<8x128xf32> to vector<8xf32>
    %108 = vector.shape_cast %107 : vector<8xf32> to vector<8x1xf32>
    %109 = math.log %108 : vector<8x1xf32>
    %110 = vector.broadcast %109 : vector<8x1xf32> to vector<8x128xf32>
    %111 = arith.subf %105, %110 : vector<8x128xf32>
    %c0_49 = arith.constant 0 : index
    %c0_50 = arith.constant 0 : index
    %c0_51 = arith.constant 0 : index
    %112 = vector.load %arg11[%c0_49, %c0_50, %c0_51] : memref<2x8x128xf32, #tpu.memory_space<vmem>>, vector<1x8x128xf32>
    %113 = vector.shape_cast %112 : vector<1x8x128xf32> to vector<8x128xf32>
    %114 = vector.shape_cast %111 : vector<8x128xf32> to vector<1x8x128xf32>
    tpu.vector_store %arg11[%c0_49, %c0_50, %c0_51], %114 {strides = array<i32>} : memref<2x8x128xf32, #tpu.memory_space<vmem>>, vector<1x8x128xf32>,
    %c1 = arith.constant 1 : index
    %c0_52 = arith.constant 0 : index
    %c0_53 = arith.constant 0 : index
    %115 = vector.load %arg7[%c1, %c0_52, %c0_53] : memref<2x1x32xf32, #tpu.memory_space<vmem>>, vector<1x1x32xf32>
    %116 = vector.shape_cast %115 : vector<1x1x32xf32> to vector<1x32xf32>
    %c1_54 = arith.constant 1 : index
    %c0_55 = arith.constant 0 : index
    %c0_56 = arith.constant 0 : index
    %117 = vector.load %arg8[%c1_54, %c0_55, %c0_56] : memref<2x1x32xf32, #tpu.memory_space<vmem>>, vector<1x1x32xf32>
    %118 = vector.shape_cast %117 : vector<1x1x32xf32> to vector<1x32xf32>
    %119 = arith.truncf %89 : vector<64x32xf32> to vector<64x32xbf16>
    %c1_57 = arith.constant 1 : index
    %c0_58 = arith.constant 0 : index
    %c0_59 = arith.constant 0 : index
    %120 = vector.load %arg3[%c1_57, %c0_58, %c0_59] : memref<2x32x64xbf16, #tpu.memory_space<vmem>>, vector<1x32x64xbf16>
    %121 = vector.shape_cast %120 : vector<1x32x64xbf16> to vector<32x64xbf16>
    %cst_60 = arith.constant dense<0.000000e+00> : vector<64x64xf32>
    %122 = tpu.matmul %119, %121, %cst_60 {dimension_numbers = #tpu.dot_dimension_numbers<[1], [0], [0], [1], [0, 0, 1, 1], [], []>} : vector<64x32xbf16>, vector<32x64xbf16>, vector<64x64xf32> -> vector<64x64xf32>
    %c1_61 = arith.constant 1 : index
    %c0_62 = arith.constant 0 : index
    %c0_63 = arith.constant 0 : index
    %123 = vector.load %arg4[%c1_61, %c0_62, %c0_63] : memref<2x1x64xf32, #tpu.memory_space<vmem>>, vector<1x1x64xf32>
    %124 = vector.shape_cast %123 : vector<1x1x64xf32> to vector<1x64xf32>
    %125 = vector.broadcast %124 : vector<1x64xf32> to vector<64x64xf32>
    %126 = arith.addf %122, %125 : vector<64x64xf32>
    %127 = arith.mulf %126, %126 : vector<64x64xf32>
    %128 = arith.mulf %126, %127 : vector<64x64xf32>
    %cst_64 = arith.constant 4.471500e-02 : f32
    %129 = vector.broadcast %cst_64 : f32 to vector<64x64xf32>
    %130 = arith.mulf %129, %128 : vector<64x64xf32>
    %131 = arith.addf %126, %130 : vector<64x64xf32>
    %cst_65 = arith.constant 0.797884583 : f32
    %132 = vector.broadcast %cst_65 : f32 to vector<64x64xf32>
    %133 = arith.mulf %132, %131 : vector<64x64xf32>
    %134 = math.tanh %133 : vector<64x64xf32>
    %cst_66 = arith.constant 1.000000e+00 : f32
    %135 = vector.broadcast %cst_66 : f32 to vector<64x64xf32>
    %136 = arith.addf %135, %134 : vector<64x64xf32>
    %cst_67 = arith.constant 5.000000e-01 : f32
    %137 = vector.broadcast %cst_67 : f32 to vector<64x64xf32>
    %138 = arith.mulf %137, %136 : vector<64x64xf32>
    %139 = arith.mulf %126, %138 : vector<64x64xf32>
    %140 = arith.truncf %139 : vector<64x64xf32> to vector<64x64xbf16>
    %c1_68 = arith.constant 1 : index
    %c0_69 = arith.constant 0 : index
    %c0_70 = arith.constant 0 : index
    %141 = vector.load %arg5[%c1_68, %c0_69, %c0_70] : memref<2x64x32xbf16, #tpu.memory_space<vmem>>, vector<1x64x32xbf16>
    %142 = vector.shape_cast %141 : vector<1x64x32xbf16> to vector<64x32xbf16>
    %cst_71 = arith.constant dense<0.000000e+00> : vector<64x32xf32>
    %143 = tpu.matmul %140, %142, %cst_71 {dimension_numbers = #tpu.dot_dimension_numbers<[1], [0], [0], [1], [0, 0, 1, 1], [], []>} : vector<64x64xbf16>, vector<64x32xbf16>, vector<64x32xf32> -> vector<64x32xf32>
    %c1_72 = arith.constant 1 : index
    %c0_73 = arith.constant 0 : index
    %c0_74 = arith.constant 0 : index
    %144 = vector.load %arg6[%c1_72, %c0_73, %c0_74] : memref<2x1x32xf32, #tpu.memory_space<vmem>>, vector<1x1x32xf32>
    %145 = vector.shape_cast %144 : vector<1x1x32xf32> to vector<1x32xf32>
    %146 = vector.broadcast %145 : vector<1x32xf32> to vector<64x32xf32>
    %147 = arith.addf %143, %146 : vector<64x32xf32>
    %148 = arith.addf %147, %89 : vector<64x32xf32>
    %149 = arith.subf %148, %5 : vector<64x32xf32>
    %cst_75 = arith.constant dense<0.000000e+00> : vector<64xf32>
    %150 = vector.multi_reduction <add>, %149, %cst_75 [1] : vector<64x32xf32> to vector<64xf32>
    %151 = vector.shape_cast %150 : vector<64xf32> to vector<64x1xf32>
    %cst_76 = arith.constant 3.200000e+01 : f32
    %152 = vector.broadcast %cst_76 : f32 to vector<64x1xf32>
    %153 = arith.divf %151, %152 : vector<64x1xf32>
    %154 = vector.broadcast %153 : vector<64x1xf32> to vector<64x32xf32>
    %155 = arith.subf %149, %154 : vector<64x32xf32>
    %156 = vector.broadcast %153 : vector<64x1xf32> to vector<64x32xf32>
    %157 = arith.subf %149, %156 : vector<64x32xf32>
    %158 = arith.mulf %155, %157 : vector<64x32xf32>
    %cst_77 = arith.constant dense<0.000000e+00> : vector<64xf32>
    %159 = vector.multi_reduction <add>, %158, %cst_77 [1] : vector<64x32xf32> to vector<64xf32>
    %160 = vector.shape_cast %159 : vector<64xf32> to vector<64x1xf32>
    %cst_78 = arith.constant 3.200000e+01 : f32
    %161 = vector.broadcast %cst_78 : f32 to vector<64x1xf32>
    %162 = arith.divf %160, %161 : vector<64x1xf32>
    %163 = vector.broadcast %153 : vector<64x1xf32> to vector<64x32xf32>
    %164 = arith.subf %149, %163 : vector<64x32xf32>
    %cst_79 = arith.constant 9.99999974E-6 : f32
    %165 = vector.broadcast %cst_79 : f32 to vector<64x1xf32>
    %166 = arith.addf %162, %165 : vector<64x1xf32>
    %167 = math.rsqrt %166 : vector<64x1xf32>
    %168 = vector.broadcast %167 : vector<64x1xf32> to vector<64x32xf32>
    %169 = arith.mulf %164, %168 : vector<64x32xf32>
    %170 = vector.broadcast %116 : vector<1x32xf32> to vector<64x32xf32>
    %171 = arith.mulf %169, %170 : vector<64x32xf32>
    %172 = vector.broadcast %118 : vector<1x32xf32> to vector<64x32xf32>
    %173 = arith.addf %171, %172 : vector<64x32xf32>
    %174 = arith.addf %173, %89 : vector<64x32xf32>
    %cst_80 = arith.constant dense<0.000000e+00> : vector<64xf32>
    %175 = vector.multi_reduction <add>, %174, %cst_80 [1] : vector<64x32xf32> to vector<64xf32>
    %176 = vector.shape_cast %175 : vector<64xf32> to vector<64x1xf32>
    %cst_81 = arith.constant 3.200000e+01 : f32
    %177 = vector.broadcast %cst_81 : f32 to vector<64x1xf32>
    %178 = arith.divf %176, %177 : vector<64x1xf32>
    %179 = vector.broadcast %178 : vector<64x1xf32> to vector<64x32xf32>
    %180 = arith.subf %174, %179 : vector<64x32xf32>
    %181 = vector.broadcast %178 : vector<64x1xf32> to vector<64x32xf32>
    %182 = arith.subf %174, %181 : vector<64x32xf32>
    %183 = arith.mulf %180, %182 : vector<64x32xf32>
    %cst_82 = arith.constant dense<0.000000e+00> : vector<64xf32>
    %184 = vector.multi_reduction <add>, %183, %cst_82 [1] : vector<64x32xf32> to vector<64xf32>
    %185 = vector.shape_cast %184 : vector<64xf32> to vector<64x1xf32>
    %cst_83 = arith.constant 3.200000e+01 : f32
    %186 = vector.broadcast %cst_83 : f32 to vector<64x1xf32>
    %187 = arith.divf %185, %186 : vector<64x1xf32>
    %188 = vector.broadcast %178 : vector<64x1xf32> to vector<64x32xf32>
    %189 = arith.subf %174, %188 : vector<64x32xf32>
    %cst_84 = arith.constant 9.99999974E-6 : f32
    %190 = vector.broadcast %cst_84 : f32 to vector<64x1xf32>
    %191 = arith.addf %187, %190 : vector<64x1xf32>
    %192 = math.rsqrt %191 : vector<64x1xf32>
    %193 = vector.broadcast %192 : vector<64x1xf32> to vector<64x32xf32>
    %194 = arith.mulf %189, %193 : vector<64x32xf32>
    %195 = vector.broadcast %116 : vector<1x32xf32> to vector<64x32xf32>
    %196 = arith.mulf %194, %195 : vector<64x32xf32>
    %197 = vector.broadcast %118 : vector<1x32xf32> to vector<64x32xf32>
    %198 = arith.addf %196, %197 : vector<64x32xf32>
    %199 = vector.shape_cast %198 : vector<64x32xf32> to vector<8x8x32xf32>
    %cst_85 = arith.constant dense<0.000000e+00> : vector<8x32xf32>
    %200 = vector.multi_reduction <add>, %199, %cst_85 [1] : vector<8x8x32xf32> to vector<8x32xf32>
    %cst_86 = arith.constant 8.000000e+00 : f32
    %201 = vector.broadcast %cst_86 : f32 to vector<8x32xf32>
    %202 = arith.divf %200, %201 : vector<8x32xf32>
    %203 = arith.truncf %202 : vector<8x32xf32> to vector<8x32xbf16>
    %c1_87 = arith.constant 1 : index
    %c0_88 = arith.constant 0 : index
    %c0_89 = arith.constant 0 : index
    %204 = vector.load %arg9[%c1_87, %c0_88, %c0_89] : memref<2x32x128xbf16, #tpu.memory_space<vmem>>, vector<1x32x128xbf16>
    %205 = vector.shape_cast %204 : vector<1x32x128xbf16> to vector<32x128xbf16>
    %cst_90 = arith.constant dense<0.000000e+00> : vector<8x128xf32>
    %206 = tpu.matmul %203, %205, %cst_90 {dimension_numbers = #tpu.dot_dimension_numbers<[1], [0], [0], [1], [0, 0, 1, 1], [], []>} : vector<8x32xbf16>, vector<32x128xbf16>, vector<8x128xf32> -> vector<8x128xf32>
    %c1_91 = arith.constant 1 : index
    %c0_92 = arith.constant 0 : index
    %c0_93 = arith.constant 0 : index
    %207 = vector.load %arg10[%c1_91, %c0_92, %c0_93] : memref<2x1x128xf32, #tpu.memory_space<vmem>>, vector<1x1x128xf32>
    %208 = vector.shape_cast %207 : vector<1x1x128xf32> to vector<1x128xf32>
    %209 = vector.broadcast %208 : vector<1x128xf32> to vector<8x128xf32>
    %210 = arith.addf %206, %209 : vector<8x128xf32>
    %cst_94 = arith.constant dense<0xFF800000> : vector<8xf32>
    %211 = vector.multi_reduction <maximumf>, %210, %cst_94 [1] : vector<8x128xf32> to vector<8xf32>
    %212 = vector.shape_cast %211 : vector<8xf32> to vector<8x1xf32>
    %213 = vector.broadcast %212 : vector<8x1xf32> to vector<8x128xf32>
    %214 = arith.subf %210, %213 : vector<8x128xf32>
    %215 = math.exp %214 : vector<8x128xf32>
    %cst_95 = arith.constant dense<0.000000e+00> : vector<8xf32>
    %216 = vector.multi_reduction <add>, %215, %cst_95 [1] : vector<8x128xf32> to vector<8xf32>
    %217 = vector.shape_cast %216 : vector<8xf32> to vector<8x1xf32>
    %218 = math.log %217 : vector<8x1xf32>
    %219 = vector.broadcast %218 : vector<8x1xf32> to vector<8x128xf32>
    %220 = arith.subf %214, %219 : vector<8x128xf32>
    %c1_96 = arith.constant 1 : index
    %c0_97 = arith.constant 0 : index
    %c0_98 = arith.constant 0 : index
    %221 = vector.load %arg11[%c1_96, %c0_97, %c0_98] : memref<2x8x128xf32, #tpu.memory_space<vmem>>, vector<1x8x128xf32>
    %222 = vector.shape_cast %221 : vector<1x8x128xf32> to vector<8x128xf32>
    %223 = vector.shape_cast %220 : vector<8x128xf32> to vector<1x8x128xf32>
    tpu.vector_store %arg11[%c1_96, %c0_97, %c0_98], %223 {strides = array<i32>} : memref<2x8x128xf32, #tpu.memory_space<vmem>>, vector<1x8x128xf32>,
    return
  }
  func.func @transform_0(%arg0: i32) -> (i32, i32, i32) {
    %c0_i32 = arith.constant 0 : i32
    %c0_i32_0 = arith.constant 0 : i32
    %c0_i32_1 = arith.constant 0 : i32
    return %arg0, %c0_i32, %c0_i32_0 : i32, i32, i32
  }
  func.func @transform_1(%arg0: i32) -> (i32, i32, i32) {
    %c0_i32 = arith.constant 0 : i32
    %c0_i32_0 = arith.constant 0 : i32
    %c0_i32_1 = arith.constant 0 : i32
    return %arg0, %c0_i32, %c0_i32_0 : i32, i32, i32
  }
  func.func @transform_2(%arg0: i32) -> (i32, i32, i32) {
    %c0_i32 = arith.constant 0 : i32
    %c0_i32_0 = arith.constant 0 : i32
    %c0_i32_1 = arith.constant 0 : i32
    %c0_i32_2 = arith.constant 0 : i32
    return %c0_i32, %c0_i32_0, %c0_i32_1 : i32, i32, i32
  }
  func.func @transform_3(%arg0: i32) -> (i32, i32, i32) {
    %c0_i32 = arith.constant 0 : i32
    %c0_i32_0 = arith.constant 0 : i32
    %c0_i32_1 = arith.constant 0 : i32
    %c0_i32_2 = arith.constant 0 : i32
    return %c0_i32, %c0_i32_0, %c0_i32_1 : i32, i32, i32
  }
  func.func @transform_4(%arg0: i32) -> (i32, i32, i32) {
    %c0_i32 = arith.constant 0 : i32
    %c0_i32_0 = arith.constant 0 : i32
    %c0_i32_1 = arith.constant 0 : i32
    %c0_i32_2 = arith.constant 0 : i32
    return %c0_i32, %c0_i32_0, %c0_i32_1 : i32, i32, i32
  }
  func.func @transform_5(%arg0: i32) -> (i32, i32, i32) {
    %c0_i32 = arith.constant 0 : i32
    %c0_i32_0 = arith.constant 0 : i32
    %c0_i32_1 = arith.constant 0 : i32
    %c0_i32_2 = arith.constant 0 : i32
    return %c0_i32, %c0_i32_0, %c0_i32_1 : i32, i32, i32
  }
  func.func @transform_6(%arg0: i32) -> (i32, i32, i32) {
    %c0_i32 = arith.constant 0 : i32
    %c0_i32_0 = arith.constant 0 : i32
    %c0_i32_1 = arith.constant 0 : i32
    %c0_i32_2 = arith.constant 0 : i32
    return %c0_i32, %c0_i32_0, %c0_i32_1 : i32, i32, i32
  }
  func.func @transform_7(%arg0: i32) -> (i32, i32, i32) {
    %c0_i32 = arith.constant 0 : i32
    %c0_i32_0 = arith.constant 0 : i32
    %c0_i32_1 = arith.constant 0 : i32
    %c0_i32_2 = arith.constant 0 : i32
    return %c0_i32, %c0_i32_0, %c0_i32_1 : i32, i32, i32
  }
  func.func @transform_8(%arg0: i32) -> (i32, i32, i32) {
    %c0_i32 = arith.constant 0 : i32
    %c0_i32_0 = arith.constant 0 : i32
    %c0_i32_1 = arith.constant 0 : i32
    %c0_i32_2 = arith.constant 0 : i32
    return %c0_i32, %c0_i32_0, %c0_i32_1 : i32, i32, i32
  }
  func.func @transform_9(%arg0: i32) -> (i32, i32, i32) {
    %c0_i32 = arith.constant 0 : i32
    %c0_i32_0 = arith.constant 0 : i32
    %c0_i32_1 = arith.constant 0 : i32
    %c0_i32_2 = arith.constant 0 : i32
    return %c0_i32, %c0_i32_0, %c0_i32_1 : i32, i32, i32
  }
  func.func @transform_10(%arg0: i32) -> (i32, i32, i32) {
    %c0_i32 = arith.constant 0 : i32
    %c0_i32_0 = arith.constant 0 : i32
    %c0_i32_1 = arith.constant 0 : i32
    return %c0_i32, %arg0, %c0_i32_0 : i32, i32, i32
  }
}

</mosaic_0001>

<llo_original>
// kernel: dmsp_forward.1
$region0: #{dmsp_forward.1}
  #allocation0 [shape = 'u32[]', space=smem, size = 0x4, offset = 0x4, fixed_abs, tag = 'smem constant byte address 0x4 - core index']
  #allocation1 [shape = 'u32[144,128]{1,0:T(1,128)}', space=vmem, size = 0x12000, scoped, tag = 'internal scratch']
  %s0 = inlined_call_operand.vmem [shape: bf16[8,8,32], index: 0, kind: input, shape index: {}]
  %s1 = inlined_call_operand.vmem [shape: bf16[8,8,32], index: 1, kind: input, shape index: {}]
  %s2 = inlined_call_operand.vmem [shape: bf16[2,32,64], index: 2, kind: input, shape index: {}]
  %s3 = inlined_call_operand.vmem [shape: f32[2,1,64], index: 3, kind: input, shape index: {}]
  %s4 = inlined_call_operand.vmem [shape: bf16[2,64,32], index: 4, kind: input, shape index: {}]
  %s5 = inlined_call_operand.hbm [shape: f32[2,1,32], index: 5, kind: input, shape index: {}]
  %s6 = inlined_call_operand.hbm [shape: f32[2,1,32], index: 6, kind: input, shape index: {}]
  %s7 = inlined_call_operand.hbm [shape: f32[2,1,32], index: 7, kind: input, shape index: {}]
  %s8 = inlined_call_operand.vmem [shape: bf16[2,32,128], index: 8, kind: input, shape index: {}]
  %s9 = inlined_call_operand.hbm [shape: f32[2,1,128], index: 9, kind: input, shape index: {}]
  %s10 = inlined_call_operand.hbm [shape: f32[2,8,128], index: 10, kind: output, shape index: {}]
  %s11 = sld [smem:[#allocation0]]
  $region66: #{dmsp_forward.1} parent=0
    _
  %s13 = ssub.s32 1, %s11
  %s14 = scalar_select 0, %s13, %s11
  $region1: #{dmsp_forward.1} parent=0
    #allocation2 [shape = 'u8[1024]{0}', space=vmem, size = 0x400, scoped, tag = 'input window, operand 5, single buffered']
    #allocation3 [shape = 's32[1]{0}', space=sflag, size = 0x4, scoped, tag = 'scoped memory for dmsp_forward.1']
    #allocation4 [shape = 's32[1]{0}', space=sflag, size = 0x4, scoped, tag = 'scoped memory for dmsp_forward.1']
    #allocation5 [shape = 'u8[1024]{0}', space=vmem, size = 0x400, scoped, tag = 'input window, operand 6, single buffered']
    #allocation6 [shape = 's32[1]{0}', space=sflag, size = 0x4, scoped, tag = 'scoped memory for dmsp_forward.1']
    #allocation7 [shape = 'u8[1024]{0}', space=vmem, size = 0x400, scoped, tag = 'input window, operand 7, single buffered']
    #allocation8 [shape = 'u8[1024]{0}', space=vmem, size = 0x400, scoped, tag = 'input window, operand 9, single buffered']
    #allocation9 [shape = 's32[1]{0}', space=sflag, size = 0x4, scoped, tag = 'scoped memory for dmsp_forward.1']
    #allocation10 [shape = 'u8[8192]{0}', space=vmem, size = 0x2000, scoped, tag = 'output window, operand 0, single buffered']
    %15 = vsyncpa [#allocation3], 0
    %16 = vsyncpa [#allocation6], 0
    %17 = vsyncpa [#allocation9], 0
    %18 = vsyncpa [#allocation4], 0
    // Predicated region
    $region2: #{dmsp_forward.1} parent=1 // pred_check
      _
    $region3: #{dmsp_forward.1} parent=1 // pred_check_branch
      %20 = sbr.rel (0) target = $region5
    $region4: #{dmsp_forward.1} parent=1 // pred_region
      _
    $region5: #{dmsp_forward.1} parent=1 // pred_fallthru
      _
    // Predicated region
    $region6: #{dmsp_forward.1} parent=1 // pred_check
      _
    $region7: #{dmsp_forward.1} parent=1 // pred_check_branch
      %22 = sbr.rel (0) target = $region9
    $region8: #{dmsp_forward.1} parent=1 // pred_region
      _
    $region9: #{dmsp_forward.1} parent=1 // pred_fallthru
      _
    // Predicated region
    $region10: #{dmsp_forward.1} parent=1 // pred_check
      _
    $region11: #{dmsp_forward.1} parent=1 // pred_check_branch
      %24 = sbr.rel (0) target = $region13
    $region12: #{dmsp_forward.1} parent=1 // pred_region
      _
    $region13: #{dmsp_forward.1} parent=1 // pred_fallthru
      _
    // Predicated region
    $region14: #{dmsp_forward.1} parent=1 // pred_check
      _
    $region15: #{dmsp_forward.1} parent=1 // pred_check_branch
      %26 = sbr.rel (0) target = $region17
    $region16: #{dmsp_forward.1} parent=1 // pred_region
      _
    $region17: #{dmsp_forward.1} parent=1 // pred_fallthru
      _
    // Predicated region
    $region18: #{dmsp_forward.1} parent=1 // pred_check
      _
    $region19: #{dmsp_forward.1} parent=1 // pred_check_branch
      %28 = sbr.rel (0) target = $region21
    $region20: #{dmsp_forward.1} parent=1 // pred_region
      _
    $region21: #{dmsp_forward.1} parent=1 // pred_fallthru
      _
    // Predicated region
    $region22: #{dmsp_forward.1} parent=1 // pred_check
      _
    $region23: #{dmsp_forward.1} parent=1 // pred_check_branch
      %30 = sbr.rel (0) target = $region25
    $region24: #{dmsp_forward.1} parent=1 // pred_region
      %s32 = ssub.s32 32, 32
      %33 = vsyncadd [#allocation3], %s32
      %s34 = sshll.u32 [#allocation2], 4
      %s35 = int_to_ptr.vmem [resolvable:$true] %s34
      %40 = dma.hbm_to_vmem [thread:$0]  %s5, 32, %s35, [#allocation3], 16, 16, 1
    $region25: #{dmsp_forward.1} parent=1 // pred_fallthru
      _
    // Predicated region
    $region26: #{dmsp_forward.1} parent=1 // pred_check
      _
    $region27: #{dmsp_forward.1} parent=1 // pred_check_branch
      %42 = sbr.rel (0) target = $region29
    $region28: #{dmsp_forward.1} parent=1 // pred_region
      %s44 = ssub.s32 32, 32
      %45 = vsyncadd [#allocation6], %s44
      %s46 = sshll.u32 [#allocation5], 4
      %s47 = int_to_ptr.vmem [resolvable:$true] %s46
      %52 = dma.hbm_to_vmem [thread:$0]  %s6, 32, %s47, [#allocation6], 16, 16, 1
    $region29: #{dmsp_forward.1} parent=1 // pred_fallthru
      _
    // Predicated region
    $region30: #{dmsp_forward.1} parent=1 // pred_check
      _
    $region31: #{dmsp_forward.1} parent=1 // pred_check_branch
      %54 = sbr.rel (0) target = $region33
    $region32: #{dmsp_forward.1} parent=1 // pred_region
      %s56 = ssub.s32 32, 32
      %57 = vsyncadd [#allocation6], %s56
      %s58 = sshll.u32 [#allocation7], 4
      %s59 = int_to_ptr.vmem [resolvable:$true] %s58
      %64 = dma.hbm_to_vmem [thread:$0]  %s7, 32, %s59, [#allocation6], 16, 16, 1
    $region33: #{dmsp_forward.1} parent=1 // pred_fallthru
      _
    // Predicated region
    $region34: #{dmsp_forward.1} parent=1 // pred_check
      _
    $region35: #{dmsp_forward.1} parent=1 // pred_check_branch
      %66 = sbr.rel (0) target = $region37
    $region36: #{dmsp_forward.1} parent=1 // pred_region
      _
    $region37: #{dmsp_forward.1} parent=1 // pred_fallthru
      _
    // Predicated region
    $region38: #{dmsp_forward.1} parent=1 // pred_check
      _
    $region39: #{dmsp_forward.1} parent=1 // pred_check_branch
      %68 = sbr.rel (0) target = $region41
    $region40: #{dmsp_forward.1} parent=1 // pred_region
      %s70 = ssub.s32 32, 32
      %71 = vsyncadd [#allocation9], %s70
      %s72 = sshll.u32 [#allocation8], 4
      %s73 = int_to_ptr.vmem [resolvable:$true] %s72
      %78 = dma.hbm_to_vmem [thread:$0]  %s9, 32, %s73, [#allocation9], 16, 16, 1
    $region41: #{dmsp_forward.1} parent=1 // pred_fallthru
      _
    // Predicated region
    $region42: #{dmsp_forward.1} parent=1 // pred_check
      _
    $region43: #{dmsp_forward.1} parent=1 // pred_check_branch
      %80 = sbr.rel (0) target = $region45
    $region44: #{dmsp_forward.1} parent=1 // pred_region
      %81 = dma.done [#allocation3], 32
    $region45: #{dmsp_forward.1} parent=1 // pred_fallthru
      _
    // Predicated region
    $region46: #{dmsp_forward.1} parent=1 // pred_check
      _
    $region47: #{dmsp_forward.1} parent=1 // pred_check_branch
      %83 = sbr.rel (0) target = $region49
    $region48: #{dmsp_forward.1} parent=1 // pred_region
      %84 = dma.done [#allocation6], 32
    $region49: #{dmsp_forward.1} parent=1 // pred_fallthru
      _
    // Predicated region
    $region50: #{dmsp_forward.1} parent=1 // pred_check
      _
    $region51: #{dmsp_forward.1} parent=1 // pred_check_branch
      %86 = sbr.rel (0) target = $region53
    $region52: #{dmsp_forward.1} parent=1 // pred_region
      %87 = dma.done [#allocation6], 32
    $region53: #{dmsp_forward.1} parent=1 // pred_fallthru
      _
    // Predicated region
    $region54: #{dmsp_forward.1} parent=1 // pred_check
      _
    $region55: #{dmsp_forward.1} parent=1 // pred_check_branch
      %89 = sbr.rel (0) target = $region57
    $region56: #{dmsp_forward.1} parent=1 // pred_region
      %90 = dma.done [#allocation9], 32
    $region57: #{dmsp_forward.1} parent=1 // pred_fallthru
      _
    %v92 = vld [vmem:[%s0] sm:$0xf]
    %v93 = vld [vmem:[%s0 + $0x4] sm:$0xf]
    %v94 = vld [vmem:[%s0 + $0x8] sm:$0xf]
    %v95 = vld [vmem:[%s0 + $0xc] sm:$0xf]
    %v96 = vld [vmem:[%s0 + $0x10] sm:$0xf]
    %v97 = vld [vmem:[%s0 + $0x14] sm:$0xf]
    %v98 = vld [vmem:[%s0 + $0x18] sm:$0xf]
    %v99 = vld [vmem:[%s0 + $0x1c] sm:$0xf]
    %v100 = vunpack.c.l.bf16 %v92
    %v101 = vunpack.c.l.bf16 %v93
    %v102 = vunpack.c.l.bf16 %v94
    %v103 = vunpack.c.l.bf16 %v95
    %v104 = vunpack.c.l.bf16 %v96
    %v105 = vunpack.c.l.bf16 %v97
    %v106 = vunpack.c.l.bf16 %v98
    %v107 = vunpack.c.l.bf16 %v99
    %v108 = vld [vmem:[%s1] sm:$0xf]
    %v109 = vld [vmem:[%s1 + $0x4] sm:$0xf]
    %v110 = vld [vmem:[%s1 + $0x8] sm:$0xf]
    %v111 = vld [vmem:[%s1 + $0xc] sm:$0xf]
    %v112 = vld [vmem:[%s1 + $0x10] sm:$0xf]
    %v113 = vld [vmem:[%s1 + $0x14] sm:$0xf]
    %v114 = vld [vmem:[%s1 + $0x18] sm:$0xf]
    %v115 = vld [vmem:[%s1 + $0x1c] sm:$0xf]
    %v116 = vunpack.c.l.bf16 %v108
    %v117 = vunpack.c.l.bf16 %v109
    %v118 = vunpack.c.l.bf16 %v110
    %v119 = vunpack.c.l.bf16 %v111
    %v120 = vunpack.c.l.bf16 %v112
    %v121 = vunpack.c.l.bf16 %v113
    %v122 = vunpack.c.l.bf16 %v114
    %v123 = vunpack.c.l.bf16 %v115
    %v124 = vld [vmem:[#allocation5] sm:$0x1]
    %v125 = vld [vmem:[#allocation7] sm:$0x1]
    %v126 = vpack.c.bf16 %v101, %v100
    %v127 = vpack.c.bf16 %v103, %v102
    %v128 = vpack.c.bf16 %v105, %v104
    %v129 = vpack.c.bf16 %v107, %v106
    %v130 = vld [vmem:[%s2] sm:$0xf]
    %v131 = vld [vmem:[%s2 + $0x4] sm:$0xf]
    %v132 = vld [vmem:[%s2 + $0x8] sm:$0xf]
    %v133 = vld [vmem:[%s2 + $0xc] sm:$0xf]
    %v134 = vld [vmem:[%s3] sm:$0x1]
    %v136 = vlaneseq
    %v137 = vshrl.u32 %v136, 7
    %v138 = vsub.s32 0, %v137
    %v139 = vrot.slane %v134, %v138
    %v145 = vunpack.c.l.b16 %v130
    %v146 = vunpack.c.l.b16 %v131
    %v147 = vunpack.c.l.b16 %v132
    %v148 = vunpack.c.l.b16 %v133
    %v149 = vpack.c.b16 %v146, %v145
    %v150 = vpack.c.b16 %v148, %v147
    %vm153 = vcmask 261120
    %v155 = vsel %vm153, %v126, 0
    %v158 = vsel %vm153, %v127, 0
    %v161 = vsel %vm153, %v128, 0
    %v164 = vsel %vm153, %v129, 0
    %166 = vmatprep.subr.bf16.mxu0 0
    %167 = vmatpush1.bf16.msra.mxu0 %v149
    %168 = vmatprep.subr.bf16.mxu0 0
    %169 = vmatpush1.bf16.msra.mxu0 %v150
    %170 = vmatprep.subr.bf16.mxu0 0
    %171 = vmatpush1.bf16.msra.mxu0 0
    %172 = vmatprep.subr.bf16.mxu0 0
    %173 = vmatpush1.bf16.msra.mxu0 0
    %174 = vmatprep.subr.bf16.mxu0 0
    %175 = vmatpush1.bf16.msra.mxu0 0
    %176 = vmatprep.subr.bf16.mxu0 0
    %177 = vmatpush1.bf16.msra.mxu0 0
    %178 = vmatprep.subr.bf16.mxu0 0
    %179 = vmatpush1.bf16.msra.mxu0 0
    %180 = vmatprep.subr.bf16.mxu0 0
    %181 = vmatpush1.bf16.msra.mxu0 0
    %182 = vmatprep.subr.bf16.mxu0 0
    %183 = vmatpush1.bf16.msra.mxu0 0
    %184 = vmatprep.subr.bf16.mxu0 0
    %185 = vmatpush1.bf16.msra.mxu0 0
    %186 = vmatprep.subr.bf16.mxu0 0
    %187 = vmatpush1.bf16.msra.mxu0 0
    %188 = vmatprep.subr.bf16.mxu0 0
    %189 = vmatpush1.bf16.msra.mxu0 0
    %190 = vmatprep.subr.bf16.mxu0 0
    %191 = vmatpush1.bf16.msra.mxu0 0
    %192 = vmatprep.subr.bf16.mxu0 0
    %193 = vmatpush1.bf16.msra.mxu0 0
    %194 = vmatprep.subr.bf16.mxu0 0
    %195 = vmatpush1.bf16.msra.mxu0 0
    %196 = vmatprep.subr.bf16.mxu0 0
    %197 = vmatpush1.bf16.msra.mxu0 0
    %198 = vmatprep.mubr.bf16.mxu0 0
    %199 = vmatmul.mubr.bf16.gmra.mrb[0].mxu0 %v155
    %v200 = vpop.f32.mrb[0].mxu0
    %v201 = vadd.f32 %v139, %v200
    %v202 = vpop.f32.mrb[0].mxu0
    %v203 = vpop.f32.mrb[0].mxu0
    %v204 = vadd.f32 %v139, %v203
    %v205 = vpop.f32.mrb[0].mxu0
    %206 = vmatprep.mubr.bf16.mxu0 0
    %207 = vmatmul.mubr.bf16.gmra.mrb[0].mxu0 %v158
    %v208 = vpop.f32.mrb[0].mxu0
    %v209 = vadd.f32 %v139, %v208
    %v210 = vpop.f32.mrb[0].mxu0
    %v211 = vpop.f32.mrb[0].mxu0
    %v212 = vadd.f32 %v139, %v211
    %v213 = vpop.f32.mrb[0].mxu0
    %214 = vmatprep.mubr.bf16.mxu0 0
    %215 = vmatmul.mubr.bf16.gmra.mrb[0].mxu0 %v161
    %v216 = vpop.f32.mrb[0].mxu0
    %v217 = vadd.f32 %v139, %v216
    %v218 = vpop.f32.mrb[0].mxu0
    %v219 = vpop.f32.mrb[0].mxu0
    %v220 = vadd.f32 %v139, %v219
    %v221 = vpop.f32.mrb[0].mxu0
    %222 = vmatprep.mubr.bf16.mxu0 0
    %223 = vmatmul.mubr.bf16.gmra.mrb[0].mxu0 %v164
    %v224 = vpop.f32.mrb[0].mxu0
    %v225 = vadd.f32 %v139, %v224
    %v226 = vpop.f32.mrb[0].mxu0
    %v227 = vpop.f32.mrb[0].mxu0
    %v228 = vadd.f32 %v139, %v227
    %v229 = vpop.f32.mrb[0].mxu0
    %230 = vdwg.mxu0
    %v231 = vmul.f32 %v201, %v201
    %v232 = vmul.f32 %v204, %v204
    %v233 = vmul.f32 %v209, %v209
    %v234 = vmul.f32 %v212, %v212
    %v235 = vmul.f32 %v217, %v217
    %v236 = vmul.f32 %v220, %v220
    %v237 = vmul.f32 %v225, %v225
    %v238 = vmul.f32 %v228, %v228
    %v239 = vmul.f32 %v201, %v231
    %v240 = vmul.f32 %v204, %v232
    %v241 = vmul.f32 %v209, %v233
    %v242 = vmul.f32 %v212, %v234
    %v243 = vmul.f32 %v217, %v235
    %v244 = vmul.f32 %v220, %v236
    %v245 = vmul.f32 %v225, %v237
    %v246 = vmul.f32 %v228, %v238
    %v247 = vmul.f32 %v239, 0.044715
    %v248 = vmul.f32 %v240, 0.044715
    %v249 = vmul.f32 %v241, 0.044715
    %v250 = vmul.f32 %v242, 0.044715
    %v251 = vmul.f32 %v243, 0.044715
    %v252 = vmul.f32 %v244, 0.044715
    %v253 = vmul.f32 %v245, 0.044715
    %v254 = vmul.f32 %v246, 0.044715
    %v255 = vadd.f32 %v201, %v247
    %v256 = vadd.f32 %v204, %v248
    %v257 = vadd.f32 %v209, %v249
    %v258 = vadd.f32 %v212, %v250
    %v259 = vadd.f32 %v217, %v251
    %v260 = vadd.f32 %v220, %v252
    %v261 = vadd.f32 %v225, %v253
    %v262 = vadd.f32 %v228, %v254
    %v263 = vmul.f32 %v255, 0.7978846
    %v264 = vmul.f32 %v256, 0.7978846
    %v265 = vmul.f32 %v257, 0.7978846
    %v266 = vmul.f32 %v258, 0.7978846
    %v267 = vmul.f32 %v259, 0.7978846
    %v268 = vmul.f32 %v260, 0.7978846
    %v269 = vmul.f32 %v261, 0.7978846
    %v270 = vmul.f32 %v262, 0.7978846
    %v271 = vtanh.pop %v263
    %v272 = vtanh.pop %v264
    %v273 = vtanh.pop %v265
    %v274 = vtanh.pop %v266
    %v275 = vtanh.pop %v267
    %v276 = vtanh.pop %v268
    %v277 = vtanh.pop %v269
    %v278 = vtanh.pop %v270
    %v279 = vadd.f32 %v271, 1.0
    %v280 = vadd.f32 %v272, 1.0
    %v281 = vadd.f32 %v273, 1.0
    %v282 = vadd.f32 %v274, 1.0
    %v283 = vadd.f32 %v275, 1.0
    %v284 = vadd.f32 %v276, 1.0
    %v285 = vadd.f32 %v277, 1.0
    %v286 = vadd.f32 %v278, 1.0
    %v287 = vmul.f32 %v279, 0.5
    %v288 = vmul.f32 %v280, 0.5
    %v289 = vmul.f32 %v281, 0.5
    %v290 = vmul.f32 %v282, 0.5
    %v291 = vmul.f32 %v283, 0.5
    %v292 = vmul.f32 %v284, 0.5
    %v293 = vmul.f32 %v285, 0.5
    %v294 = vmul.f32 %v286, 0.5
    %v295 = vmul.f32 %v201, %v287
    %v296 = vmul.f32 %v204, %v288
    %v297 = vmul.f32 %v209, %v289
    %v298 = vmul.f32 %v212, %v290
    %v299 = vmul.f32 %v217, %v291
    %v300 = vmul.f32 %v220, %v292
    %v301 = vmul.f32 %v225, %v293
    %v302 = vmul.f32 %v228, %v294
    %v303 = vpack.c.bf16 %v296, %v295
    %v304 = vpack.c.bf16 %v298, %v297
    %v305 = vpack.c.bf16 %v300, %v299
    %v306 = vpack.c.bf16 %v302, %v301
    %v307 = vld [vmem:[%s4] sm:$0xf]
    %v308 = vld [vmem:[%s4 + $0x4] sm:$0xf]
    %v309 = vld [vmem:[%s4 + $0x8] sm:$0xf]
    %v310 = vld [vmem:[%s4 + $0xc] sm:$0xf]
    %v311 = vld [vmem:[%s4 + $0x10] sm:$0xf]
    %v312 = vld [vmem:[%s4 + $0x14] sm:$0xf]
    %v313 = vld [vmem:[%s4 + $0x18] sm:$0xf]
    %v314 = vld [vmem:[%s4 + $0x1c] sm:$0xf]
    %v315 = vld [vmem:[#allocation2] sm:$0x1]
    %v317 = vlaneseq
    %v318 = vshrl.u32 %v317, 7
    %v319 = vsub.s32 0, %v318
    %v320 = vrot.slane %v315, %v319
    %v330 = vunpack.c.l.b16 %v307
    %v331 = vunpack.c.l.b16 %v308
    %v332 = vunpack.c.l.b16 %v309
    %v333 = vunpack.c.l.b16 %v310
    %v334 = vunpack.c.l.b16 %v311
    %v335 = vunpack.c.l.b16 %v312
    %v336 = vunpack.c.l.b16 %v313
    %v337 = vunpack.c.l.b16 %v314
    %v338 = vpack.c.b16 %v331, %v330
    %v339 = vpack.c.b16 %v333, %v332
    %v340 = vpack.c.b16 %v335, %v334
    %v341 = vpack.c.b16 %v337, %v336
    %vm346 = vcmask 523264
    %v348 = vsel %vm346, %v303, 0
    %v351 = vsel %vm346, %v304, 0
    %v354 = vsel %vm346, %v305, 0
    %v357 = vsel %vm346, %v306, 0
    %359 = vmatprep.subr.bf16.mxu0 0
    %360 = vmatpush1.bf16.msra.mxu0 %v338
    %361 = vmatprep.subr.bf16.mxu0 0
    %362 = vmatpush1.bf16.msra.mxu0 %v339
    %363 = vmatprep.subr.bf16.mxu0 0
    %364 = vmatpush1.bf16.msra.mxu0 %v340
    %365 = vmatprep.subr.bf16.mxu0 0
    %366 = vmatpush1.bf16.msra.mxu0 %v341
    %367 = vmatprep.subr.bf16.mxu0 0
    %368 = vmatpush1.bf16.msra.mxu0 0
    %369 = vmatprep.subr.bf16.mxu0 0
    %370 = vmatpush1.bf16.msra.mxu0 0
    %371 = vmatprep.subr.bf16.mxu0 0
    %372 = vmatpush1.bf16.msra.mxu0 0
    %373 = vmatprep.subr.bf16.mxu0 0
    %374 = vmatpush1.bf16.msra.mxu0 0
    %375 = vmatprep.subr.bf16.mxu0 0
    %376 = vmatpush1.bf16.msra.mxu0 0
    %377 = vmatprep.subr.bf16.mxu0 0
    %378 = vmatpush1.bf16.msra.mxu0 0
    %379 = vmatprep.subr.bf16.mxu0 0
    %380 = vmatpush1.bf16.msra.mxu0 0
    %381 = vmatprep.subr.bf16.mxu0 0
    %382 = vmatpush1.bf16.msra.mxu0 0
    %383 = vmatprep.subr.bf16.mxu0 0
    %384 = vmatpush1.bf16.msra.mxu0 0
    %385 = vmatprep.subr.bf16.mxu0 0
    %386 = vmatpush1.bf16.msra.mxu0 0
    %387 = vmatprep.subr.bf16.mxu0 0
    %388 = vmatpush1.bf16.msra.mxu0 0
    %389 = vmatprep.subr.bf16.mxu0 0
    %390 = vmatpush1.bf16.msra.mxu0 0
    %391 = vmatprep.mubr.bf16.mxu0 0
    %392 = vmatmul.mubr.bf16.gmra.mrb[0].mxu0 %v348
    %v393 = vpop.f32.mrb[0].mxu0
    %v394 = vadd.f32 %v320, %v393
    %v395 = vpop.f32.mrb[0].mxu0
    %v396 = vpop.f32.mrb[0].mxu0
    %v397 = vadd.f32 %v320, %v396
    %v398 = vpop.f32.mrb[0].mxu0
    %399 = vmatprep.mubr.bf16.mxu0 0
    %400 = vmatmul.mubr.bf16.gmra.mrb[0].mxu0 %v351
    %v401 = vpop.f32.mrb[0].mxu0
    %v402 = vadd.f32 %v320, %v401
    %v403 = vpop.f32.mrb[0].mxu0
    %v404 = vpop.f32.mrb[0].mxu0
    %v405 = vadd.f32 %v320, %v404
    %v406 = vpop.f32.mrb[0].mxu0
    %407 = vmatprep.mubr.bf16.mxu0 0
    %408 = vmatmul.mubr.bf16.gmra.mrb[0].mxu0 %v354
    %v409 = vpop.f32.mrb[0].mxu0
    %v410 = vadd.f32 %v320, %v409
    %v411 = vpop.f32.mrb[0].mxu0
    %v412 = vpop.f32.mrb[0].mxu0
    %v413 = vadd.f32 %v320, %v412
    %v414 = vpop.f32.mrb[0].mxu0
    %415 = vmatprep.mubr.bf16.mxu0 0
    %416 = vmatmul.mubr.bf16.gmra.mrb[0].mxu0 %v357
    %v417 = vpop.f32.mrb[0].mxu0
    %v418 = vadd.f32 %v320, %v417
    %v419 = vpop.f32.mrb[0].mxu0
    %v420 = vpop.f32.mrb[0].mxu0
    %v421 = vadd.f32 %v320, %v420
    %v422 = vpop.f32.mrb[0].mxu0
    %423 = vdwg.mxu0
    %v424 = vadd.f32 %v394, %v100
    %v425 = vadd.f32 %v397, %v101
    %v426 = vadd.f32 %v402, %v102
    %v427 = vadd.f32 %v405, %v103
    %v428 = vadd.f32 %v410, %v104
    %v429 = vadd.f32 %v413, %v105
    %v430 = vadd.f32 %v418, %v106
    %v431 = vadd.f32 %v421, %v107
    %v432 = vsub.f32 %v424, %v116
    %v433 = vsub.f32 %v425, %v117
    %v434 = vsub.f32 %v426, %v118
    %v435 = vsub.f32 %v427, %v119
    %v436 = vsub.f32 %v428, %v120
    %v437 = vsub.f32 %v429, %v121
    %v438 = vsub.f32 %v430, %v122
    %v439 = vsub.f32 %v431, %v123
    %v440 = vsel %vm153, %v432, 0.0
    %441 = vadd.xlane.f32.xlu0 %v440
    %v442 = vpop.xlane.xlu0 %441
    %v443 = vsel %vm153, %v433, 0.0
    %444 = vadd.xlane.f32.xlu0 %v443
    %v445 = vpop.xlane.xlu0 %444
    %v446 = vsel %vm153, %v434, 0.0
    %447 = vadd.xlane.f32.xlu0 %v446
    %v448 = vpop.xlane.xlu0 %447
    %v449 = vsel %vm153, %v435, 0.0
    %450 = vadd.xlane.f32.xlu0 %v449
    %v451 = vpop.xlane.xlu0 %450
    %v452 = vsel %vm153, %v436, 0.0
    %453 = vadd.xlane.f32.xlu0 %v452
    %v454 = vpop.xlane.xlu0 %453
    %v455 = vsel %vm153, %v437, 0.0
    %456 = vadd.xlane.f32.xlu0 %v455
    %v457 = vpop.xlane.xlu0 %456
    %v458 = vsel %vm153, %v438, 0.0
    %459 = vadd.xlane.f32.xlu0 %v458
    %v460 = vpop.xlane.xlu0 %459
    %v461 = vsel %vm153, %v439, 0.0
    %462 = vadd.xlane.f32.xlu0 %v461
    %v463 = vpop.xlane.xlu0 %462
    %v464 = vrcp.pop 32.0
    %v465 = vmul.f32 %v442, %v464
    %v466 = vmul.f32 %v445, %v464
    %v467 = vmul.f32 %v448, %v464
    %v468 = vmul.f32 %v451, %v464
    %v469 = vmul.f32 %v454, %v464
    %v470 = vmul.f32 %v457, %v464
    %v471 = vmul.f32 %v460, %v464
    %v472 = vmul.f32 %v463, %v464
    %v473 = vsub.f32 %v432, %v465
    %v474 = vsub.f32 %v433, %v466
    %v475 = vsub.f32 %v434, %v467
    %v476 = vsub.f32 %v435, %v468
    %v477 = vsub.f32 %v436, %v469
    %v478 = vsub.f32 %v437, %v470
    %v479 = vsub.f32 %v438, %v471
    %v480 = vsub.f32 %v439, %v472
    %v481 = vmul.f32 %v473, %v473
    %v482 = vmul.f32 %v474, %v474
    %v483 = vmul.f32 %v475, %v475
    %v484 = vmul.f32 %v476, %v476
    %v485 = vmul.f32 %v477, %v477
    %v486 = vmul.f32 %v478, %v478
    %v487 = vmul.f32 %v479, %v479
    %v488 = vmul.f32 %v480, %v480
    %v489 = vsel %vm153, %v481, 0.0
    %490 = vadd.xlane.f32.xlu0 %v489
    %v491 = vpop.xlane.xlu0 %490
    %v492 = vsel %vm153, %v482, 0.0
    %493 = vadd.xlane.f32.xlu0 %v492
    %v494 = vpop.xlane.xlu0 %493
    %v495 = vsel %vm153, %v483, 0.0
    %496 = vadd.xlane.f32.xlu0 %v495
    %v497 = vpop.xlane.xlu0 %496
    %v498 = vsel %vm153, %v484, 0.0
    %499 = vadd.xlane.f32.xlu0 %v498
    %v500 = vpop.xlane.xlu0 %499
    %v501 = vsel %vm153, %v485, 0.0
    %502 = vadd.xlane.f32.xlu0 %v501
    %v503 = vpop.xlane.xlu0 %502
    %v504 = vsel %vm153, %v486, 0.0
    %505 = vadd.xlane.f32.xlu0 %v504
    %v506 = vpop.xlane.xlu0 %505
    %v507 = vsel %vm153, %v487, 0.0
    %508 = vadd.xlane.f32.xlu0 %v507
    %v509 = vpop.xlane.xlu0 %508
    %v510 = vsel %vm153, %v488, 0.0
    %511 = vadd.xlane.f32.xlu0 %v510
    %v512 = vpop.xlane.xlu0 %511
    %v513 = vmul.f32 %v491, %v464
    %v514 = vmul.f32 %v494, %v464
    %v515 = vmul.f32 %v497, %v464
    %v516 = vmul.f32 %v500, %v464
    %v517 = vmul.f32 %v503, %v464
    %v518 = vmul.f32 %v506, %v464
    %v519 = vmul.f32 %v509, %v464
    %v520 = vmul.f32 %v512, %v464
    %v521 = vadd.f32 %v513, 1e-05
    %v522 = vadd.f32 %v514, 1e-05
    %v523 = vadd.f32 %v515, 1e-05
    %v524 = vadd.f32 %v516, 1e-05
    %v525 = vadd.f32 %v517, 1e-05
    %v526 = vadd.f32 %v518, 1e-05
    %v527 = vadd.f32 %v519, 1e-05
    %v528 = vadd.f32 %v520, 1e-05
    %v529 = vrsqrt.pop %v521
    %v530 = vrsqrt.pop %v522
    %v531 = vrsqrt.pop %v523
    %v532 = vrsqrt.pop %v524
    %v533 = vrsqrt.pop %v525
    %v534 = vrsqrt.pop %v526
    %v535 = vrsqrt.pop %v527
    %v536 = vrsqrt.pop %v528
    %v537 = vmul.f32 %v473, %v529
    %v538 = vmul.f32 %v474, %v530
    %v539 = vmul.f32 %v475, %v531
    %v540 = vmul.f32 %v476, %v532
    %v541 = vmul.f32 %v477, %v533
    %v542 = vmul.f32 %v478, %v534
    %v543 = vmul.f32 %v479, %v535
    %v544 = vmul.f32 %v480, %v536
    %v546 = vlaneseq
    %v547 = vshrl.u32 %v546, 7
    %v548 = vsub.s32 0, %v547
    %v549 = vrot.slane %v124, %v548
    %v551 = vmul.f32 %v537, %v549
    %v552 = vmul.f32 %v538, %v549
    %v553 = vmul.f32 %v539, %v549
    %v554 = vmul.f32 %v540, %v549
    %v555 = vmul.f32 %v541, %v549
    %v556 = vmul.f32 %v542, %v549
    %v557 = vmul.f32 %v543, %v549
    %v558 = vmul.f32 %v544, %v549
    %v560 = vlaneseq
    %v561 = vshrl.u32 %v560, 7
    %v562 = vsub.s32 0, %v561
    %v563 = vrot.slane %v125, %v562
    %v565 = vadd.f32 %v551, %v563
    %v566 = vadd.f32 %v552, %v563
    %v567 = vadd.f32 %v553, %v563
    %v568 = vadd.f32 %v554, %v563
    %v569 = vadd.f32 %v555, %v563
    %v570 = vadd.f32 %v556, %v563
    %v571 = vadd.f32 %v557, %v563
    %v572 = vadd.f32 %v558, %v563
    %v573 = vadd.f32 %v565, %v100
    %v574 = vadd.f32 %v566, %v101
    %v575 = vadd.f32 %v567, %v102
    %v576 = vadd.f32 %v568, %v103
    %v577 = vadd.f32 %v569, %v104
    %v578 = vadd.f32 %v570, %v105
    %v579 = vadd.f32 %v571, %v106
    %v580 = vadd.f32 %v572, %v107
    %v581 = vsel %vm153, %v573, 0.0
    %582 = vadd.xlane.f32.xlu0 %v581
    %v583 = vpop.xlane.xlu0 %582
    %v584 = vsel %vm153, %v574, 0.0
    %585 = vadd.xlane.f32.xlu0 %v584
    %v586 = vpop.xlane.xlu0 %585
    %v587 = vsel %vm153, %v575, 0.0
    %588 = vadd.xlane.f32.xlu0 %v587
    %v589 = vpop.xlane.xlu0 %588
    %v590 = vsel %vm153, %v576, 0.0
    %591 = vadd.xlane.f32.xlu0 %v590
    %v592 = vpop.xlane.xlu0 %591
    %v593 = vsel %vm153, %v577, 0.0
    %594 = vadd.xlane.f32.xlu0 %v593
    %v595 = vpop.xlane.xlu0 %594
    %v596 = vsel %vm153, %v578, 0.0
    %597 = vadd.xlane.f32.xlu0 %v596
    %v598 = vpop.xlane.xlu0 %597
    %v599 = vsel %vm153, %v579, 0.0
    %600 = vadd.xlane.f32.xlu0 %v599
    %v601 = vpop.xlane.xlu0 %600
    %v602 = vsel %vm153, %v580, 0.0
    %603 = vadd.xlane.f32.xlu0 %v602
    %v604 = vpop.xlane.xlu0 %603
    %v605 = vmul.f32 %v583, %v464
    %v606 = vmul.f32 %v586, %v464
    %v607 = vmul.f32 %v589, %v464
    %v608 = vmul.f32 %v592, %v464
    %v609 = vmul.f32 %v595, %v464
    %v610 = vmul.f32 %v598, %v464
    %v611 = vmul.f32 %v601, %v464
    %v612 = vmul.f32 %v604, %v464
    %v613 = vsub.f32 %v573, %v605
    %v614 = vsub.f32 %v574, %v606
    %v615 = vsub.f32 %v575, %v607
    %v616 = vsub.f32 %v576, %v608
    %v617 = vsub.f32 %v577, %v609
    %v618 = vsub.f32 %v578, %v610
    %v619 = vsub.f32 %v579, %v611
    %v620 = vsub.f32 %v580, %v612
    %v621 = vmul.f32 %v613, %v613
    %v622 = vmul.f32 %v614, %v614
    %v623 = vmul.f32 %v615, %v615
    %v624 = vmul.f32 %v616, %v616
    %v625 = vmul.f32 %v617, %v617
    %v626 = vmul.f32 %v618, %v618
    %v627 = vmul.f32 %v619, %v619
    %v628 = vmul.f32 %v620, %v620
    %v629 = vsel %vm153, %v621, 0.0
    %630 = vadd.xlane.f32.xlu0 %v629
    %v631 = vpop.xlane.xlu0 %630
    %v632 = vsel %vm153, %v622, 0.0
    %633 = vadd.xlane.f32.xlu0 %v632
    %v634 = vpop.xlane.xlu0 %633
    %v635 = vsel %vm153, %v623, 0.0
    %636 = vadd.xlane.f32.xlu0 %v635
    %v637 = vpop.xlane.xlu0 %636
    %v638 = vsel %vm153, %v624, 0.0
    %639 = vadd.xlane.f32.xlu0 %v638
    %v640 = vpop.xlane.xlu0 %639
    %v641 = vsel %vm153, %v625, 0.0
    %642 = vadd.xlane.f32.xlu0 %v641
    %v643 = vpop.xlane.xlu0 %642
    %v644 = vsel %vm153, %v626, 0.0
    %645 = vadd.xlane.f32.xlu0 %v644
    %v646 = vpop.xlane.xlu0 %645
    %v647 = vsel %vm153, %v627, 0.0
    %648 = vadd.xlane.f32.xlu0 %v647
    %v649 = vpop.xlane.xlu0 %648
    %v650 = vsel %vm153, %v628, 0.0
    %651 = vadd.xlane.f32.xlu0 %v650
    %v652 = vpop.xlane.xlu0 %651
    %v653 = vmul.f32 %v631, %v464
    %v654 = vmul.f32 %v634, %v464
    %v655 = vmul.f32 %v637, %v464
    %v656 = vmul.f32 %v640, %v464
    %v657 = vmul.f32 %v643, %v464
    %v658 = vmul.f32 %v646, %v464
    %v659 = vmul.f32 %v649, %v464
    %v660 = vmul.f32 %v652, %v464
    %v661 = vadd.f32 %v653, 1e-05
    %v662 = vadd.f32 %v654, 1e-05
    %v663 = vadd.f32 %v655, 1e-05
    %v664 = vadd.f32 %v656, 1e-05
    %v665 = vadd.f32 %v657, 1e-05
    %v666 = vadd.f32 %v658, 1e-05
    %v667 = vadd.f32 %v659, 1e-05
    %v668 = vadd.f32 %v660, 1e-05
    %v669 = vrsqrt.pop %v661
    %v670 = vrsqrt.pop %v662
    %v671 = vrsqrt.pop %v663
    %v672 = vrsqrt.pop %v664
    %v673 = vrsqrt.pop %v665
    %v674 = vrsqrt.pop %v666
    %v675 = vrsqrt.pop %v667
    %v676 = vrsqrt.pop %v668
    %v677 = vmul.f32 %v613, %v669
    %v678 = vmul.f32 %v614, %v670
    %v679 = vmul.f32 %v615, %v671
    %v680 = vmul.f32 %v616, %v672
    %v681 = vmul.f32 %v617, %v673
    %v682 = vmul.f32 %v618, %v674
    %v683 = vmul.f32 %v619, %v675
    %v684 = vmul.f32 %v620, %v676
    %v685 = vmul.f32 %v677, %v549
    %v686 = vmul.f32 %v678, %v549
    %v687 = vmul.f32 %v679, %v549
    %v688 = vmul.f32 %v680, %v549
    %v689 = vmul.f32 %v681, %v549
    %v690 = vmul.f32 %v682, %v549
    %v691 = vmul.f32 %v683, %v549
    %v692 = vmul.f32 %v684, %v549
    %v693 = vadd.f32 %v685, %v563
    %v694 = vadd.f32 %v686, %v563
    %v695 = vadd.f32 %v687, %v563
    %v696 = vadd.f32 %v688, %v563
    %v697 = vadd.f32 %v689, %v563
    %v698 = vadd.f32 %v690, %v563
    %v699 = vadd.f32 %v691, %v563
    %v700 = vadd.f32 %v692, %v563
    %v701 = vsel %vm153, %v693, 0.0
    %v702 = vrot.slane %v701, 4
    %v703 = vadd.f32 %v701, %v702
    %v704 = vrot.slane %v703, 2
    %v705 = vadd.f32 %v703, %v704
    %v706 = vrot.slane %v705, 1
    %v707 = vadd.f32 %v705, %v706
    %v708 = vsel %vm153, %v694, 0.0
    %v709 = vrot.slane %v708, 4
    %v710 = vadd.f32 %v708, %v709
    %v711 = vrot.slane %v710, 2
    %v712 = vadd.f32 %v710, %v711
    %v713 = vrot.slane %v712, 1
    %v714 = vadd.f32 %v712, %v713
    %v715 = vsel %vm153, %v695, 0.0
    %v716 = vrot.slane %v715, 4
    %v717 = vadd.f32 %v715, %v716
    %v718 = vrot.slane %v717, 2
    %v719 = vadd.f32 %v717, %v718
    %v720 = vrot.slane %v719, 1
    %v721 = vadd.f32 %v719, %v720
    %v722 = vsel %vm153, %v696, 0.0
    %v723 = vrot.slane %v722, 4
    %v724 = vadd.f32 %v722, %v723
    %v725 = vrot.slane %v724, 2
    %v726 = vadd.f32 %v724, %v725
    %v727 = vrot.slane %v726, 1
    %v728 = vadd.f32 %v726, %v727
    %v729 = vsel %vm153, %v697, 0.0
    %v730 = vrot.slane %v729, 4
    %v731 = vadd.f32 %v729, %v730
    %v732 = vrot.slane %v731, 2
    %v733 = vadd.f32 %v731, %v732
    %v734 = vrot.slane %v733, 1
    %v735 = vadd.f32 %v733, %v734
    %v736 = vsel %vm153, %v698, 0.0
    %v737 = vrot.slane %v736, 4
    %v738 = vadd.f32 %v736, %v737
    %v739 = vrot.slane %v738, 2
    %v740 = vadd.f32 %v738, %v739
    %v741 = vrot.slane %v740, 1
    %v742 = vadd.f32 %v740, %v741
    %v743 = vsel %vm153, %v699, 0.0
    %v744 = vrot.slane %v743, 4
    %v745 = vadd.f32 %v743, %v744
    %v746 = vrot.slane %v745, 2
    %v747 = vadd.f32 %v745, %v746
    %v748 = vrot.slane %v747, 1
    %v749 = vadd.f32 %v747, %v748
    %v750 = vsel %vm153, %v700, 0.0
    %v751 = vrot.slane %v750, 4
    %v752 = vadd.f32 %v750, %v751
    %v753 = vrot.slane %v752, 2
    %v754 = vadd.f32 %v752, %v753
    %v755 = vrot.slane %v754, 1
    %v756 = vadd.f32 %v754, %v755
    %v757 = vrcp.pop 8.0
    %v758 = vmul.f32 %v707, %v757
    %v759 = vmul.f32 %v714, %v757
    %v760 = vmul.f32 %v721, %v757
    %v761 = vmul.f32 %v728, %v757
    %v762 = vmul.f32 %v735, %v757
    %v763 = vmul.f32 %v742, %v757
    %v764 = vmul.f32 %v749, %v757
    %v765 = vmul.f32 %v756, %v757
    %v766 = vpack.c.bf16 %v758, %v758
    %v767 = vpack.c.bf16 %v759, %v759
    %v768 = vpack.c.bf16 %v760, %v760
    %v769 = vpack.c.bf16 %v761, %v761
    %v770 = vpack.c.bf16 %v762, %v762
    %v771 = vpack.c.bf16 %v763, %v763
    %v772 = vpack.c.bf16 %v764, %v764
    %v773 = vpack.c.bf16 %v765, %v765
    %v774 = vld [vmem:[%s8] sm:$0xf]
    %v775 = vld [vmem:[%s8 + $0x4] sm:$0xf]
    %v776 = vld [vmem:[%s8 + $0x8] sm:$0xf]
    %v777 = vld [vmem:[%s8 + $0xc] sm:$0xf]
    %v778 = vld [vmem:[#allocation8] sm:$0x1]
    %v780 = vlaneseq
    %v781 = vshrl.u32 %v780, 7
    %v782 = vsub.s32 0, %v781
    %v783 = vrot.slane %v778, %v782
    %v793 = vunpack.c.l.b16 %v766
    %v794 = vunpack.c.l.b16 %v767
    %v795 = vunpack.c.l.b16 %v768
    %v796 = vunpack.c.l.b16 %v769
    %v797 = vunpack.c.l.b16 %v770
    %v798 = vunpack.c.l.b16 %v771
    %v799 = vunpack.c.l.b16 %v772
    %v800 = vunpack.c.l.b16 %v773
    %vm801 = vcmask 1041409
    %v802 = vsel %vm801, %v794, %v793
    %vm803 = vcmask 1042434
    %v804 = vsel %vm803, %v795, %v802
    %vm805 = vcmask 1043459
    %v806 = vsel %vm805, %v796, %v804
    %vm807 = vcmask 1044484
    %v808 = vsel %vm807, %v797, %v806
    %vm809 = vcmask 1045509
    %v810 = vsel %vm809, %v798, %v808
    %vm811 = vcmask 1046534
    %v812 = vsel %vm811, %v799, %v810
    %vm813 = vcmask 1047559
    %v814 = vsel %vm813, %v800, %v812
    %v815 = vpack.c.b16 %v814, %v814
    %v820 = vunpack.c.l.b16 %v774
    %v821 = vunpack.c.l.b16 %v775
    %v822 = vunpack.c.l.b16 %v776
    %v823 = vunpack.c.l.b16 %v777
    %v824 = vpack.c.b16 %v821, %v820
    %v825 = vpack.c.b16 %v823, %v822
    %v829 = vsel %vm153, %v815, 0
    %831 = vmatprep.subr.bf16.mxu0 0
    %832 = vmatpush1.bf16.msra.mxu0 %v824
    %833 = vmatprep.subr.bf16.mxu0 0
    %834 = vmatpush1.bf16.msra.mxu0 %v825
    %835 = vmatprep.subr.bf16.mxu0 0
    %836 = vmatpush1.bf16.msra.mxu0 0
    %837 = vmatprep.subr.bf16.mxu0 0
    %838 = vmatpush1.bf16.msra.mxu0 0
    %839 = vmatprep.subr.bf16.mxu0 0
    %840 = vmatpush1.bf16.msra.mxu0 0
    %841 = vmatprep.subr.bf16.mxu0 0
    %842 = vmatpush1.bf16.msra.mxu0 0
    %843 = vmatprep.subr.bf16.mxu0 0
    %844 = vmatpush1.bf16.msra.mxu0 0
    %845 = vmatprep.subr.bf16.mxu0 0
    %846 = vmatpush1.bf16.msra.mxu0 0
    %847 = vmatprep.subr.bf16.mxu0 0
    %848 = vmatpush1.bf16.msra.mxu0 0
    %849 = vmatprep.subr.bf16.mxu0 0
    %850 = vmatpush1.bf16.msra.mxu0 0
    %851 = vmatprep.subr.bf16.mxu0 0
    %852 = vmatpush1.bf16.msra.mxu0 0
    %853 = vmatprep.subr.bf16.mxu0 0
    %854 = vmatpush1.bf16.msra.mxu0 0
    %855 = vmatprep.subr.bf16.mxu0 0
    %856 = vmatpush1.bf16.msra.mxu0 0
    %857 = vmatprep.subr.bf16.mxu0 0
    %858 = vmatpush1.bf16.msra.mxu0 0
    %859 = vmatprep.subr.bf16.mxu0 0
    %860 = vmatpush1.bf16.msra.mxu0 0
    %861 = vmatprep.subr.bf16.mxu0 0
    %862 = vmatpush1.bf16.msra.mxu0 0
    %863 = vmatprep.mubr.bf16.mxu0 0
    %864 = vmatmul.mubr.bf16.gmra.mrb[0].mxu0 %v829
    %v865 = vpop.f32.mrb[0].mxu0
    %v866 = vadd.f32 %v783, %v865
    %v867 = vpop.f32.mrb[0].mxu0
    %v868 = vpop.f32.mrb[0].mxu0
    %v869 = vpop.f32.mrb[0].mxu0
    %870 = vdwg.mxu0
    %871 = vmax.xlane.f32.xlu0 %v866
    %v872 = vpop.xlane.xlu0 %871
    %v873 = vsub.f32 %v866, %v872
    %v874 = vmul.f32 %v873, 1.442695
    %v875 = vpow.pop %v874
    %876 = vadd.xlane.f32.xlu0 %v875
    %v877 = vpop.xlane.xlu0 %876
    %v878 = vlog2.pop %v877
    %v879 = vmul.f32 %v878, 0.6931472
    %v880 = vsub.f32 %v873, %v879
    %881 = vst [vmem:[#allocation10] sm:$0xff] %v880
    %s882 = scalar_lea.vmem [#allocation5], 1
    %v883 = vld [vmem:[%s882] sm:$0x1]
    %s884 = scalar_lea.vmem [#allocation7], 1
    %v885 = vld [vmem:[%s884] sm:$0x1]
    %v886 = vpack.c.bf16 %v694, %v693
    %v887 = vpack.c.bf16 %v696, %v695
    %v888 = vpack.c.bf16 %v698, %v697
    %v889 = vpack.c.bf16 %v700, %v699
    %s890 = scalar_lea.vmem %s2, 16
    %v891 = vld [vmem:[%s890] sm:$0xf]
    %v892 = vld [vmem:[%s890 + $0x4] sm:$0xf]
    %v893 = vld [vmem:[%s890 + $0x8] sm:$0xf]
    %v894 = vld [vmem:[%s890 + $0xc] sm:$0xf]
    %s895 = scalar_lea.vmem %s3, 1
    %v896 = vld [vmem:[%s895] sm:$0x1]
    %v898 = vlaneseq
    %v899 = vshrl.u32 %v898, 7
    %v900 = vsub.s32 0, %v899
    %v901 = vrot.slane %v896, %v900
    %v907 = vunpack.c.l.b16 %v891
    %v908 = vunpack.c.l.b16 %v892
    %v909 = vunpack.c.l.b16 %v893
    %v910 = vunpack.c.l.b16 %v894
    %v911 = vpack.c.b16 %v908, %v907
    %v912 = vpack.c.b16 %v910, %v909
    %v916 = vsel %vm153, %v886, 0
    %v919 = vsel %vm153, %v887, 0
    %v922 = vsel %vm153, %v888, 0
    %v925 = vsel %vm153, %v889, 0
    %927 = vmatprep.subr.bf16.mxu0 0
    %928 = vmatpush1.bf16.msra.mxu0 %v911
    %929 = vmatprep.subr.bf16.mxu0 0
    %930 = vmatpush1.bf16.msra.mxu0 %v912
    %931 = vmatprep.subr.bf16.mxu0 0
    %932 = vmatpush1.bf16.msra.mxu0 0
    %933 = vmatprep.subr.bf16.mxu0 0
    %934 = vmatpush1.bf16.msra.mxu0 0
    %935 = vmatprep.subr.bf16.mxu0 0
    %936 = vmatpush1.bf16.msra.mxu0 0
    %937 = vmatprep.subr.bf16.mxu0 0
    %938 = vmatpush1.bf16.msra.mxu0 0
    %939 = vmatprep.subr.bf16.mxu0 0
    %940 = vmatpush1.bf16.msra.mxu0 0
    %941 = vmatprep.subr.bf16.mxu0 0
    %942 = vmatpush1.bf16.msra.mxu0 0
    %943 = vmatprep.subr.bf16.mxu0 0
    %944 = vmatpush1.bf16.msra.mxu0 0
    %945 = vmatprep.subr.bf16.mxu0 0
    %946 = vmatpush1.bf16.msra.mxu0 0
    %947 = vmatprep.subr.bf16.mxu0 0
    %948 = vmatpush1.bf16.msra.mxu0 0
    %949 = vmatprep.subr.bf16.mxu0 0
    %950 = vmatpush1.bf16.msra.mxu0 0
    %951 = vmatprep.subr.bf16.mxu0 0
    %952 = vmatpush1.bf16.msra.mxu0 0
    %953 = vmatprep.subr.bf16.mxu0 0
    %954 = vmatpush1.bf16.msra.mxu0 0
    %955 = vmatprep.subr.bf16.mxu0 0
    %956 = vmatpush1.bf16.msra.mxu0 0
    %957 = vmatprep.subr.bf16.mxu0 0
    %958 = vmatpush1.bf16.msra.mxu0 0
    %959 = vmatprep.mubr.bf16.mxu0 0
    %960 = vmatmul.mubr.bf16.gmra.mrb[0].mxu0 %v916
    %v961 = vpop.f32.mrb[0].mxu0
    %v962 = vadd.f32 %v901, %v961
    %v963 = vpop.f32.mrb[0].mxu0
    %v964 = vpop.f32.mrb[0].mxu0
    %v965 = vadd.f32 %v901, %v964
    %v966 = vpop.f32.mrb[0].mxu0
    %967 = vmatprep.mubr.bf16.mxu0 0
    %968 = vmatmul.mubr.bf16.gmra.mrb[0].mxu0 %v919
    %v969 = vpop.f32.mrb[0].mxu0
    %v970 = vadd.f32 %v901, %v969
    %v971 = vpop.f32.mrb[0].mxu0
    %v972 = vpop.f32.mrb[0].mxu0
    %v973 = vadd.f32 %v901, %v972
    %v974 = vpop.f32.mrb[0].mxu0
    %975 = vmatprep.mubr.bf16.mxu0 0
    %976 = vmatmul.mubr.bf16.gmra.mrb[0].mxu0 %v922
    %v977 = vpop.f32.mrb[0].mxu0
    %v978 = vadd.f32 %v901, %v977
    %v979 = vpop.f32.mrb[0].mxu0
    %v980 = vpop.f32.mrb[0].mxu0
    %v981 = vadd.f32 %v901, %v980
    %v982 = vpop.f32.mrb[0].mxu0
    %983 = vmatprep.mubr.bf16.mxu0 0
    %984 = vmatmul.mubr.bf16.gmra.mrb[0].mxu0 %v925
    %v985 = vpop.f32.mrb[0].mxu0
    %v986 = vadd.f32 %v901, %v985
    %v987 = vpop.f32.mrb[0].mxu0
    %v988 = vpop.f32.mrb[0].mxu0
    %v989 = vadd.f32 %v901, %v988
    %v990 = vpop.f32.mrb[0].mxu0
    %991 = vdwg.mxu0
    %v992 = vmul.f32 %v962, %v962
    %v993 = vmul.f32 %v965, %v965
    %v994 = vmul.f32 %v970, %v970
    %v995 = vmul.f32 %v973, %v973
    %v996 = vmul.f32 %v978, %v978
    %v997 = vmul.f32 %v981, %v981
    %v998 = vmul.f32 %v986, %v986
    %v999 = vmul.f32 %v989, %v989
    %v1000 = vmul.f32 %v962, %v992
    %v1001 = vmul.f32 %v965, %v993
    %v1002 = vmul.f32 %v970, %v994
    %v1003 = vmul.f32 %v973, %v995
    %v1004 = vmul.f32 %v978, %v996
    %v1005 = vmul.f32 %v981, %v997
    %v1006 = vmul.f32 %v986, %v998
    %v1007 = vmul.f32 %v989, %v999
    %v1008 = vmul.f32 %v1000, 0.044715
    %v1009 = vmul.f32 %v1001, 0.044715
    %v1010 = vmul.f32 %v1002, 0.044715
    %v1011 = vmul.f32 %v1003, 0.044715
    %v1012 = vmul.f32 %v1004, 0.044715
    %v1013 = vmul.f32 %v1005, 0.044715
    %v1014 = vmul.f32 %v1006, 0.044715
    %v1015 = vmul.f32 %v1007, 0.044715
    %v1016 = vadd.f32 %v962, %v1008
    %v1017 = vadd.f32 %v965, %v1009
    %v1018 = vadd.f32 %v970, %v1010
    %v1019 = vadd.f32 %v973, %v1011
    %v1020 = vadd.f32 %v978, %v1012
    %v1021 = vadd.f32 %v981, %v1013
    %v1022 = vadd.f32 %v986, %v1014
    %v1023 = vadd.f32 %v989, %v1015
    %v1024 = vmul.f32 %v1016, 0.7978846
    %v1025 = vmul.f32 %v1017, 0.7978846
    %v1026 = vmul.f32 %v1018, 0.7978846
    %v1027 = vmul.f32 %v1019, 0.7978846
    %v1028 = vmul.f32 %v1020, 0.7978846
    %v1029 = vmul.f32 %v1021, 0.7978846
    %v1030 = vmul.f32 %v1022, 0.7978846
    %v1031 = vmul.f32 %v1023, 0.7978846
    %v1032 = vtanh.pop %v1024
    %v1033 = vtanh.pop %v1025
    %v1034 = vtanh.pop %v1026
    %v1035 = vtanh.pop %v1027
    %v1036 = vtanh.pop %v1028
    %v1037 = vtanh.pop %v1029
    %v1038 = vtanh.pop %v1030
    %v1039 = vtanh.pop %v1031
    %v1040 = vadd.f32 %v1032, 1.0
    %v1041 = vadd.f32 %v1033, 1.0
    %v1042 = vadd.f32 %v1034, 1.0
    %v1043 = vadd.f32 %v1035, 1.0
    %v1044 = vadd.f32 %v1036, 1.0
    %v1045 = vadd.f32 %v1037, 1.0
    %v1046 = vadd.f32 %v1038, 1.0
    %v1047 = vadd.f32 %v1039, 1.0
    %v1048 = vmul.f32 %v1040, 0.5
    %v1049 = vmul.f32 %v1041, 0.5
    %v1050 = vmul.f32 %v1042, 0.5
    %v1051 = vmul.f32 %v1043, 0.5
    %v1052 = vmul.f32 %v1044, 0.5
    %v1053 = vmul.f32 %v1045, 0.5
    %v1054 = vmul.f32 %v1046, 0.5
    %v1055 = vmul.f32 %v1047, 0.5
    %v1056 = vmul.f32 %v962, %v1048
    %v1057 = vmul.f32 %v965, %v1049
    %v1058 = vmul.f32 %v970, %v1050
    %v1059 = vmul.f32 %v973, %v1051
    %v1060 = vmul.f32 %v978, %v1052
    %v1061 = vmul.f32 %v981, %v1053
    %v1062 = vmul.f32 %v986, %v1054
    %v1063 = vmul.f32 %v989, %v1055
    %v1064 = vpack.c.bf16 %v1057, %v1056
    %v1065 = vpack.c.bf16 %v1059, %v1058
    %v1066 = vpack.c.bf16 %v1061, %v1060
    %v1067 = vpack.c.bf16 %v1063, %v1062
    %s1068 = scalar_lea.vmem %s4, 32
    %v1069 = vld [vmem:[%s1068] sm:$0xf]
    %v1070 = vld [vmem:[%s1068 + $0x4] sm:$0xf]
    %v1071 = vld [vmem:[%s1068 + $0x8] sm:$0xf]
    %v1072 = vld [vmem:[%s1068 + $0xc] sm:$0xf]
    %v1073 = vld [vmem:[%s1068 + $0x10] sm:$0xf]
    %v1074 = vld [vmem:[%s1068 + $0x14] sm:$0xf]
    %v1075 = vld [vmem:[%s1068 + $0x18] sm:$0xf]
    %v1076 = vld [vmem:[%s1068 + $0x1c] sm:$0xf]
    %s1077 = scalar_lea.vmem [#allocation2], 1
    %v1078 = vld [vmem:[%s1077] sm:$0x1]
    %v1080 = vlaneseq
    %v1081 = vshrl.u32 %v1080, 7
    %v1082 = vsub.s32 0, %v1081
    %v1083 = vrot.slane %v1078, %v1082
    %v1093 = vunpack.c.l.b16 %v1069
    %v1094 = vunpack.c.l.b16 %v1070
    %v1095 = vunpack.c.l.b16 %v1071
    %v1096 = vunpack.c.l.b16 %v1072
    %v1097 = vunpack.c.l.b16 %v1073
    %v1098 = vunpack.c.l.b16 %v1074
    %v1099 = vunpack.c.l.b16 %v1075
    %v1100 = vunpack.c.l.b16 %v1076
    %v1101 = vpack.c.b16 %v1094, %v1093
    %v1102 = vpack.c.b16 %v1096, %v1095
    %v1103 = vpack.c.b16 %v1098, %v1097
    %v1104 = vpack.c.b16 %v1100, %v1099
    %v1110 = vsel %vm346, %v1064, 0
    %v1113 = vsel %vm346, %v1065, 0
    %v1116 = vsel %vm346, %v1066, 0
    %v1119 = vsel %vm346, %v1067, 0
    %1121 = vmatprep.subr.bf16.mxu0 0
    %1122 = vmatpush1.bf16.msra.mxu0 %v1101
    %1123 = vmatprep.subr.bf16.mxu0 0
    %1124 = vmatpush1.bf16.msra.mxu0 %v1102
    %1125 = vmatprep.subr.bf16.mxu0 0
    %1126 = vmatpush1.bf16.msra.mxu0 %v1103
    %1127 = vmatprep.subr.bf16.mxu0 0
    %1128 = vmatpush1.bf16.msra.mxu0 %v1104
    %1129 = vmatprep.subr.bf16.mxu0 0
    %1130 = vmatpush1.bf16.msra.mxu0 0
    %1131 = vmatprep.subr.bf16.mxu0 0
    %1132 = vmatpush1.bf16.msra.mxu0 0
    %1133 = vmatprep.subr.bf16.mxu0 0
    %1134 = vmatpush1.bf16.msra.mxu0 0
    %1135 = vmatprep.subr.bf16.mxu0 0
    %1136 = vmatpush1.bf16.msra.mxu0 0
    %1137 = vmatprep.subr.bf16.mxu0 0
    %1138 = vmatpush1.bf16.msra.mxu0 0
    %1139 = vmatprep.subr.bf16.mxu0 0
    %1140 = vmatpush1.bf16.msra.mxu0 0
    %1141 = vmatprep.subr.bf16.mxu0 0
    %1142 = vmatpush1.bf16.msra.mxu0 0
    %1143 = vmatprep.subr.bf16.mxu0 0
    %1144 = vmatpush1.bf16.msra.mxu0 0
    %1145 = vmatprep.subr.bf16.mxu0 0
    %1146 = vmatpush1.bf16.msra.mxu0 0
    %1147 = vmatprep.subr.bf16.mxu0 0
    %1148 = vmatpush1.bf16.msra.mxu0 0
    %1149 = vmatprep.subr.bf16.mxu0 0
    %1150 = vmatpush1.bf16.msra.mxu0 0
    %1151 = vmatprep.subr.bf16.mxu0 0
    %1152 = vmatpush1.bf16.msra.mxu0 0
    %1153 = vmatprep.mubr.bf16.mxu0 0
    %1154 = vmatmul.mubr.bf16.gmra.mrb[0].mxu0 %v1110
    %v1155 = vpop.f32.mrb[0].mxu0
    %v1156 = vadd.f32 %v1083, %v1155
    %v1157 = vpop.f32.mrb[0].mxu0
    %v1158 = vpop.f32.mrb[0].mxu0
    %v1159 = vadd.f32 %v1083, %v1158
    %v1160 = vpop.f32.mrb[0].mxu0
    %1161 = vmatprep.mubr.bf16.mxu0 0
    %1162 = vmatmul.mubr.bf16.gmra.mrb[0].mxu0 %v1113
    %v1163 = vpop.f32.mrb[0].mxu0
    %v1164 = vadd.f32 %v1083, %v1163
    %v1165 = vpop.f32.mrb[0].mxu0
    %v1166 = vpop.f32.mrb[0].mxu0
    %v1167 = vadd.f32 %v1083, %v1166
    %v1168 = vpop.f32.mrb[0].mxu0
    %1169 = vmatprep.mubr.bf16.mxu0 0
    %1170 = vmatmul.mubr.bf16.gmra.mrb[0].mxu0 %v1116
    %v1171 = vpop.f32.mrb[0].mxu0
    %v1172 = vadd.f32 %v1083, %v1171
    %v1173 = vpop.f32.mrb[0].mxu0
    %v1174 = vpop.f32.mrb[0].mxu0
    %v1175 = vadd.f32 %v1083, %v1174
    %v1176 = vpop.f32.mrb[0].mxu0
    %1177 = vmatprep.mubr.bf16.mxu0 0
    %1178 = vmatmul.mubr.bf16.gmra.mrb[0].mxu0 %v1119
    %v1179 = vpop.f32.mrb[0].mxu0
    %v1180 = vadd.f32 %v1083, %v1179
    %v1181 = vpop.f32.mrb[0].mxu0
    %v1182 = vpop.f32.mrb[0].mxu0
    %v1183 = vadd.f32 %v1083, %v1182
    %v1184 = vpop.f32.mrb[0].mxu0
    %1185 = vdwg.mxu0
    %v1186 = vadd.f32 %v1156, %v693
    %v1187 = vadd.f32 %v1159, %v694
    %v1188 = vadd.f32 %v1164, %v695
    %v1189 = vadd.f32 %v1167, %v696
    %v1190 = vadd.f32 %v1172, %v697
    %v1191 = vadd.f32 %v1175, %v698
    %v1192 = vadd.f32 %v1180, %v699
    %v1193 = vadd.f32 %v1183, %v700
    %v1194 = vsub.f32 %v1186, %v116
    %v1195 = vsub.f32 %v1187, %v117
    %v1196 = vsub.f32 %v1188, %v118
    %v1197 = vsub.f32 %v1189, %v119
    %v1198 = vsub.f32 %v1190, %v120
    %v1199 = vsub.f32 %v1191, %v121
    %v1200 = vsub.f32 %v1192, %v122
    %v1201 = vsub.f32 %v1193, %v123
    %v1202 = vsel %vm153, %v1194, 0.0
    %1203 = vadd.xlane.f32.xlu0 %v1202
    %v1204 = vpop.xlane.xlu0 %1203
    %v1205 = vsel %vm153, %v1195, 0.0
    %1206 = vadd.xlane.f32.xlu0 %v1205
    %v1207 = vpop.xlane.xlu0 %1206
    %v1208 = vsel %vm153, %v1196, 0.0
    %1209 = vadd.xlane.f32.xlu0 %v1208
    %v1210 = vpop.xlane.xlu0 %1209
    %v1211 = vsel %vm153, %v1197, 0.0
    %1212 = vadd.xlane.f32.xlu0 %v1211
    %v1213 = vpop.xlane.xlu0 %1212
    %v1214 = vsel %vm153, %v1198, 0.0
    %1215 = vadd.xlane.f32.xlu0 %v1214
    %v1216 = vpop.xlane.xlu0 %1215
    %v1217 = vsel %vm153, %v1199, 0.0
    %1218 = vadd.xlane.f32.xlu0 %v1217
    %v1219 = vpop.xlane.xlu0 %1218
    %v1220 = vsel %vm153, %v1200, 0.0
    %1221 = vadd.xlane.f32.xlu0 %v1220
    %v1222 = vpop.xlane.xlu0 %1221
    %v1223 = vsel %vm153, %v1201, 0.0
    %1224 = vadd.xlane.f32.xlu0 %v1223
    %v1225 = vpop.xlane.xlu0 %1224
    %v1226 = vmul.f32 %v1204, %v464
    %v1227 = vmul.f32 %v1207, %v464
    %v1228 = vmul.f32 %v1210, %v464
    %v1229 = vmul.f32 %v1213, %v464
    %v1230 = vmul.f32 %v1216, %v464
    %v1231 = vmul.f32 %v1219, %v464
    %v1232 = vmul.f32 %v1222, %v464
    %v1233 = vmul.f32 %v1225, %v464
    %v1234 = vsub.f32 %v1194, %v1226
    %v1235 = vsub.f32 %v1195, %v1227
    %v1236 = vsub.f32 %v1196, %v1228
    %v1237 = vsub.f32 %v1197, %v1229
    %v1238 = vsub.f32 %v1198, %v1230
    %v1239 = vsub.f32 %v1199, %v1231
    %v1240 = vsub.f32 %v1200, %v1232
    %v1241 = vsub.f32 %v1201, %v1233
    %v1242 = vmul.f32 %v1234, %v1234
    %v1243 = vmul.f32 %v1235, %v1235
    %v1244 = vmul.f32 %v1236, %v1236
    %v1245 = vmul.f32 %v1237, %v1237
    %v1246 = vmul.f32 %v1238, %v1238
    %v1247 = vmul.f32 %v1239, %v1239
    %v1248 = vmul.f32 %v1240, %v1240
    %v1249 = vmul.f32 %v1241, %v1241
    %v1250 = vsel %vm153, %v1242, 0.0
    %1251 = vadd.xlane.f32.xlu0 %v1250
    %v1252 = vpop.xlane.xlu0 %1251
    %v1253 = vsel %vm153, %v1243, 0.0
    %1254 = vadd.xlane.f32.xlu0 %v1253
    %v1255 = vpop.xlane.xlu0 %1254
    %v1256 = vsel %vm153, %v1244, 0.0
    %1257 = vadd.xlane.f32.xlu0 %v1256
    %v1258 = vpop.xlane.xlu0 %1257
    %v1259 = vsel %vm153, %v1245, 0.0
    %1260 = vadd.xlane.f32.xlu0 %v1259
    %v1261 = vpop.xlane.xlu0 %1260
    %v1262 = vsel %vm153, %v1246, 0.0
    %1263 = vadd.xlane.f32.xlu0 %v1262
    %v1264 = vpop.xlane.xlu0 %1263
    %v1265 = vsel %vm153, %v1247, 0.0
    %1266 = vadd.xlane.f32.xlu0 %v1265
    %v1267 = vpop.xlane.xlu0 %1266
    %v1268 = vsel %vm153, %v1248, 0.0
    %1269 = vadd.xlane.f32.xlu0 %v1268
    %v1270 = vpop.xlane.xlu0 %1269
    %v1271 = vsel %vm153, %v1249, 0.0
    %1272 = vadd.xlane.f32.xlu0 %v1271
    %v1273 = vpop.xlane.xlu0 %1272
    %v1274 = vmul.f32 %v1252, %v464
    %v1275 = vmul.f32 %v1255, %v464
    %v1276 = vmul.f32 %v1258, %v464
    %v1277 = vmul.f32 %v1261, %v464
    %v1278 = vmul.f32 %v1264, %v464
    %v1279 = vmul.f32 %v1267, %v464
    %v1280 = vmul.f32 %v1270, %v464
    %v1281 = vmul.f32 %v1273, %v464
    %v1282 = vadd.f32 %v1274, 1e-05
    %v1283 = vadd.f32 %v1275, 1e-05
    %v1284 = vadd.f32 %v1276, 1e-05
    %v1285 = vadd.f32 %v1277, 1e-05
    %v1286 = vadd.f32 %v1278, 1e-05
    %v1287 = vadd.f32 %v1279, 1e-05
    %v1288 = vadd.f32 %v1280, 1e-05
    %v1289 = vadd.f32 %v1281, 1e-05
    %v1290 = vrsqrt.pop %v1282
    %v1291 = vrsqrt.pop %v1283
    %v1292 = vrsqrt.pop %v1284
    %v1293 = vrsqrt.pop %v1285
    %v1294 = vrsqrt.pop %v1286
    %v1295 = vrsqrt.pop %v1287
    %v1296 = vrsqrt.pop %v1288
    %v1297 = vrsqrt.pop %v1289
    %v1298 = vmul.f32 %v1234, %v1290
    %v1299 = vmul.f32 %v1235, %v1291
    %v1300 = vmul.f32 %v1236, %v1292
    %v1301 = vmul.f32 %v1237, %v1293
    %v1302 = vmul.f32 %v1238, %v1294
    %v1303 = vmul.f32 %v1239, %v1295
    %v1304 = vmul.f32 %v1240, %v1296
    %v1305 = vmul.f32 %v1241, %v1297
    %v1307 = vlaneseq
    %v1308 = vshrl.u32 %v1307, 7
    %v1309 = vsub.s32 0, %v1308
    %v1310 = vrot.slane %v883, %v1309
    %v1312 = vmul.f32 %v1298, %v1310
    %v1313 = vmul.f32 %v1299, %v1310
    %v1314 = vmul.f32 %v1300, %v1310
    %v1315 = vmul.f32 %v1301, %v1310
    %v1316 = vmul.f32 %v1302, %v1310
    %v1317 = vmul.f32 %v1303, %v1310
    %v1318 = vmul.f32 %v1304, %v1310
    %v1319 = vmul.f32 %v1305, %v1310
    %v1321 = vlaneseq
    %v1322 = vshrl.u32 %v1321, 7
    %v1323 = vsub.s32 0, %v1322
    %v1324 = vrot.slane %v885, %v1323
    %v1326 = vadd.f32 %v1312, %v1324
    %v1327 = vadd.f32 %v1313, %v1324
    %v1328 = vadd.f32 %v1314, %v1324
    %v1329 = vadd.f32 %v1315, %v1324
    %v1330 = vadd.f32 %v1316, %v1324
    %v1331 = vadd.f32 %v1317, %v1324
    %v1332 = vadd.f32 %v1318, %v1324
    %v1333 = vadd.f32 %v1319, %v1324
    %v1334 = vadd.f32 %v1326, %v693
    %v1335 = vadd.f32 %v1327, %v694
    %v1336 = vadd.f32 %v1328, %v695
    %v1337 = vadd.f32 %v1329, %v696
    %v1338 = vadd.f32 %v1330, %v697
    %v1339 = vadd.f32 %v1331, %v698
    %v1340 = vadd.f32 %v1332, %v699
    %v1341 = vadd.f32 %v1333, %v700
    %v1342 = vsel %vm153, %v1334, 0.0
    %1343 = vadd.xlane.f32.xlu0 %v1342
    %v1344 = vpop.xlane.xlu0 %1343
    %v1345 = vsel %vm153, %v1335, 0.0
    %1346 = vadd.xlane.f32.xlu0 %v1345
    %v1347 = vpop.xlane.xlu0 %1346
    %v1348 = vsel %vm153, %v1336, 0.0
    %1349 = vadd.xlane.f32.xlu0 %v1348
    %v1350 = vpop.xlane.xlu0 %1349
    %v1351 = vsel %vm153, %v1337, 0.0
    %1352 = vadd.xlane.f32.xlu0 %v1351
    %v1353 = vpop.xlane.xlu0 %1352
    %v1354 = vsel %vm153, %v1338, 0.0
    %1355 = vadd.xlane.f32.xlu0 %v1354
    %v1356 = vpop.xlane.xlu0 %1355
    %v1357 = vsel %vm153, %v1339, 0.0
    %1358 = vadd.xlane.f32.xlu0 %v1357
    %v1359 = vpop.xlane.xlu0 %1358
    %v1360 = vsel %vm153, %v1340, 0.0
    %1361 = vadd.xlane.f32.xlu0 %v1360
    %v1362 = vpop.xlane.xlu0 %1361
    %v1363 = vsel %vm153, %v1341, 0.0
    %1364 = vadd.xlane.f32.xlu0 %v1363
    %v1365 = vpop.xlane.xlu0 %1364
    %v1366 = vmul.f32 %v1344, %v464
    %v1367 = vmul.f32 %v1347, %v464
    %v1368 = vmul.f32 %v1350, %v464
    %v1369 = vmul.f32 %v1353, %v464
    %v1370 = vmul.f32 %v1356, %v464
    %v1371 = vmul.f32 %v1359, %v464
    %v1372 = vmul.f32 %v1362, %v464
    %v1373 = vmul.f32 %v1365, %v464
    %v1374 = vsub.f32 %v1334, %v1366
    %v1375 = vsub.f32 %v1335, %v1367
    %v1376 = vsub.f32 %v1336, %v1368
    %v1377 = vsub.f32 %v1337, %v1369
    %v1378 = vsub.f32 %v1338, %v1370
    %v1379 = vsub.f32 %v1339, %v1371
    %v1380 = vsub.f32 %v1340, %v1372
    %v1381 = vsub.f32 %v1341, %v1373
    %v1382 = vmul.f32 %v1374, %v1374
    %v1383 = vmul.f32 %v1375, %v1375
    %v1384 = vmul.f32 %v1376, %v1376
    %v1385 = vmul.f32 %v1377, %v1377
    %v1386 = vmul.f32 %v1378, %v1378
    %v1387 = vmul.f32 %v1379, %v1379
    %v1388 = vmul.f32 %v1380, %v1380
    %v1389 = vmul.f32 %v1381, %v1381
    %v1390 = vsel %vm153, %v1382, 0.0
    %1391 = vadd.xlane.f32.xlu0 %v1390
    %v1392 = vpop.xlane.xlu0 %1391
    %v1393 = vsel %vm153, %v1383, 0.0
    %1394 = vadd.xlane.f32.xlu0 %v1393
    %v1395 = vpop.xlane.xlu0 %1394
    %v1396 = vsel %vm153, %v1384, 0.0
    %1397 = vadd.xlane.f32.xlu0 %v1396
    %v1398 = vpop.xlane.xlu0 %1397
    %v1399 = vsel %vm153, %v1385, 0.0
    %1400 = vadd.xlane.f32.xlu0 %v1399
    %v1401 = vpop.xlane.xlu0 %1400
    %v1402 = vsel %vm153, %v1386, 0.0
    %1403 = vadd.xlane.f32.xlu0 %v1402
    %v1404 = vpop.xlane.xlu0 %1403
    %v1405 = vsel %vm153, %v1387, 0.0
    %1406 = vadd.xlane.f32.xlu0 %v1405
    %v1407 = vpop.xlane.xlu0 %1406
    %v1408 = vsel %vm153, %v1388, 0.0
    %1409 = vadd.xlane.f32.xlu0 %v1408
    %v1410 = vpop.xlane.xlu0 %1409
    %v1411 = vsel %vm153, %v1389, 0.0
    %1412 = vadd.xlane.f32.xlu0 %v1411
    %v1413 = vpop.xlane.xlu0 %1412
    %v1414 = vmul.f32 %v1392, %v464
    %v1415 = vmul.f32 %v1395, %v464
    %v1416 = vmul.f32 %v1398, %v464
    %v1417 = vmul.f32 %v1401, %v464
    %v1418 = vmul.f32 %v1404, %v464
    %v1419 = vmul.f32 %v1407, %v464
    %v1420 = vmul.f32 %v1410, %v464
    %v1421 = vmul.f32 %v1413, %v464
    %v1422 = vadd.f32 %v1414, 1e-05
    %v1423 = vadd.f32 %v1415, 1e-05
    %v1424 = vadd.f32 %v1416, 1e-05
    %v1425 = vadd.f32 %v1417, 1e-05
    %v1426 = vadd.f32 %v1418, 1e-05
    %v1427 = vadd.f32 %v1419, 1e-05
    %v1428 = vadd.f32 %v1420, 1e-05
    %v1429 = vadd.f32 %v1421, 1e-05
    %v1430 = vrsqrt.pop %v1422
    %v1431 = vrsqrt.pop %v1423
    %v1432 = vrsqrt.pop %v1424
    %v1433 = vrsqrt.pop %v1425
    %v1434 = vrsqrt.pop %v1426
    %v1435 = vrsqrt.pop %v1427
    %v1436 = vrsqrt.pop %v1428
    %v1437 = vrsqrt.pop %v1429
    %v1438 = vmul.f32 %v1374, %v1430
    %v1439 = vmul.f32 %v1375, %v1431
    %v1440 = vmul.f32 %v1376, %v1432
    %v1441 = vmul.f32 %v1377, %v1433
    %v1442 = vmul.f32 %v1378, %v1434
    %v1443 = vmul.f32 %v1379, %v1435
    %v1444 = vmul.f32 %v1380, %v1436
    %v1445 = vmul.f32 %v1381, %v1437
    %v1446 = vmul.f32 %v1438, %v1310
    %v1447 = vmul.f32 %v1439, %v1310
    %v1448 = vmul.f32 %v1440, %v1310
    %v1449 = vmul.f32 %v1441, %v1310
    %v1450 = vmul.f32 %v1442, %v1310
    %v1451 = vmul.f32 %v1443, %v1310
    %v1452 = vmul.f32 %v1444, %v1310
    %v1453 = vmul.f32 %v1445, %v1310
    %v1454 = vadd.f32 %v1446, %v1324
    %v1455 = vadd.f32 %v1447, %v1324
    %v1456 = vadd.f32 %v1448, %v1324
    %v1457 = vadd.f32 %v1449, %v1324
    %v1458 = vadd.f32 %v1450, %v1324
    %v1459 = vadd.f32 %v1451, %v1324
    %v1460 = vadd.f32 %v1452, %v1324
    %v1461 = vadd.f32 %v1453, %v1324
    %v1462 = vsel %vm153, %v1454, 0.0
    %v1463 = vrot.slane %v1462, 4
    %v1464 = vadd.f32 %v1462, %v1463
    %v1465 = vrot.slane %v1464, 2
    %v1466 = vadd.f32 %v1464, %v1465
    %v1467 = vrot.slane %v1466, 1
    %v1468 = vadd.f32 %v1466, %v1467
    %v1469 = vsel %vm153, %v1455, 0.0
    %v1470 = vrot.slane %v1469, 4
    %v1471 = vadd.f32 %v1469, %v1470
    %v1472 = vrot.slane %v1471, 2
    %v1473 = vadd.f32 %v1471, %v1472
    %v1474 = vrot.slane %v1473, 1
    %v1475 = vadd.f32 %v1473, %v1474
    %v1476 = vsel %vm153, %v1456, 0.0
    %v1477 = vrot.slane %v1476, 4
    %v1478 = vadd.f32 %v1476, %v1477
    %v1479 = vrot.slane %v1478, 2
    %v1480 = vadd.f32 %v1478, %v1479
    %v1481 = vrot.slane %v1480, 1
    %v1482 = vadd.f32 %v1480, %v1481
    %v1483 = vsel %vm153, %v1457, 0.0
    %v1484 = vrot.slane %v1483, 4
    %v1485 = vadd.f32 %v1483, %v1484
    %v1486 = vrot.slane %v1485, 2
    %v1487 = vadd.f32 %v1485, %v1486
    %v1488 = vrot.slane %v1487, 1
    %v1489 = vadd.f32 %v1487, %v1488
    %v1490 = vsel %vm153, %v1458, 0.0
    %v1491 = vrot.slane %v1490, 4
    %v1492 = vadd.f32 %v1490, %v1491
    %v1493 = vrot.slane %v1492, 2
    %v1494 = vadd.f32 %v1492, %v1493
    %v1495 = vrot.slane %v1494, 1
    %v1496 = vadd.f32 %v1494, %v1495
    %v1497 = vsel %vm153, %v1459, 0.0
    %v1498 = vrot.slane %v1497, 4
    %v1499 = vadd.f32 %v1497, %v1498
    %v1500 = vrot.slane %v1499, 2
    %v1501 = vadd.f32 %v1499, %v1500
    %v1502 = vrot.slane %v1501, 1
    %v1503 = vadd.f32 %v1501, %v1502
    %v1504 = vsel %vm153, %v1460, 0.0
    %v1505 = vrot.slane %v1504, 4
    %v1506 = vadd.f32 %v1504, %v1505
    %v1507 = vrot.slane %v1506, 2
    %v1508 = vadd.f32 %v1506, %v1507
    %v1509 = vrot.slane %v1508, 1
    %v1510 = vadd.f32 %v1508, %v1509
    %v1511 = vsel %vm153, %v1461, 0.0
    %v1512 = vrot.slane %v1511, 4
    %v1513 = vadd.f32 %v1511, %v1512
    %v1514 = vrot.slane %v1513, 2
    %v1515 = vadd.f32 %v1513, %v1514
    %v1516 = vrot.slane %v1515, 1
    %v1517 = vadd.f32 %v1515, %v1516
    %v1518 = vmul.f32 %v1468, %v757
    %v1519 = vmul.f32 %v1475, %v757
    %v1520 = vmul.f32 %v1482, %v757
    %v1521 = vmul.f32 %v1489, %v757
    %v1522 = vmul.f32 %v1496, %v757
    %v1523 = vmul.f32 %v1503, %v757
    %v1524 = vmul.f32 %v1510, %v757
    %v1525 = vmul.f32 %v1517, %v757
    %v1526 = vpack.c.bf16 %v1518, %v1518
    %v1527 = vpack.c.bf16 %v1519, %v1519
    %v1528 = vpack.c.bf16 %v1520, %v1520
    %v1529 = vpack.c.bf16 %v1521, %v1521
    %v1530 = vpack.c.bf16 %v1522, %v1522
    %v1531 = vpack.c.bf16 %v1523, %v1523
    %v1532 = vpack.c.bf16 %v1524, %v1524
    %v1533 = vpack.c.bf16 %v1525, %v1525
    %s1534 = scalar_lea.vmem %s8, 16
    %v1535 = vld [vmem:[%s1534] sm:$0xf]
    %v1536 = vld [vmem:[%s1534 + $0x4] sm:$0xf]
    %v1537 = vld [vmem:[%s1534 + $0x8] sm:$0xf]
    %v1538 = vld [vmem:[%s1534 + $0xc] sm:$0xf]
    %s1539 = scalar_lea.vmem [#allocation8], 1
    %v1540 = vld [vmem:[%s1539] sm:$0x1]
    %v1542 = vlaneseq
    %v1543 = vshrl.u32 %v1542, 7
    %v1544 = vsub.s32 0, %v1543
    %v1545 = vrot.slane %v1540, %v1544
    %v1555 = vunpack.c.l.b16 %v1526
    %v1556 = vunpack.c.l.b16 %v1527
    %v1557 = vunpack.c.l.b16 %v1528
    %v1558 = vunpack.c.l.b16 %v1529
    %v1559 = vunpack.c.l.b16 %v1530
    %v1560 = vunpack.c.l.b16 %v1531
    %v1561 = vunpack.c.l.b16 %v1532
    %v1562 = vunpack.c.l.b16 %v1533
    %v1563 = vsel %vm801, %v1556, %v1555
    %v1564 = vsel %vm803, %v1557, %v1563
    %v1565 = vsel %vm805, %v1558, %v1564
    %v1566 = vsel %vm807, %v1559, %v1565
    %v1567 = vsel %vm809, %v1560, %v1566
    %v1568 = vsel %vm811, %v1561, %v1567
    %v1569 = vsel %vm813, %v1562, %v1568
    %v1570 = vpack.c.b16 %v1569, %v1569
    %v1575 = vunpack.c.l.b16 %v1535
    %v1576 = vunpack.c.l.b16 %v1536
    %v1577 = vunpack.c.l.b16 %v1537
    %v1578 = vunpack.c.l.b16 %v1538
    %v1579 = vpack.c.b16 %v1576, %v1575
    %v1580 = vpack.c.b16 %v1578, %v1577
    %v1584 = vsel %vm153, %v1570, 0
    %1586 = vmatprep.subr.bf16.mxu0 0
    %1587 = vmatpush1.bf16.msra.mxu0 %v1579
    %1588 = vmatprep.subr.bf16.mxu0 0
    %1589 = vmatpush1.bf16.msra.mxu0 %v1580
    %1590 = vmatprep.subr.bf16.mxu0 0
    %1591 = vmatpush1.bf16.msra.mxu0 0
    %1592 = vmatprep.subr.bf16.mxu0 0
    %1593 = vmatpush1.bf16.msra.mxu0 0
    %1594 = vmatprep.subr.bf16.mxu0 0
    %1595 = vmatpush1.bf16.msra.mxu0 0
    %1596 = vmatprep.subr.bf16.mxu0 0
    %1597 = vmatpush1.bf16.msra.mxu0 0
    %1598 = vmatprep.subr.bf16.mxu0 0
    %1599 = vmatpush1.bf16.msra.mxu0 0
    %1600 = vmatprep.subr.bf16.mxu0 0
    %1601 = vmatpush1.bf16.msra.mxu0 0
    %1602 = vmatprep.subr.bf16.mxu0 0
    %1603 = vmatpush1.bf16.msra.mxu0 0
    %1604 = vmatprep.subr.bf16.mxu0 0
    %1605 = vmatpush1.bf16.msra.mxu0 0
    %1606 = vmatprep.subr.bf16.mxu0 0
    %1607 = vmatpush1.bf16.msra.mxu0 0
    %1608 = vmatprep.subr.bf16.mxu0 0
    %1609 = vmatpush1.bf16.msra.mxu0 0
    %1610 = vmatprep.subr.bf16.mxu0 0
    %1611 = vmatpush1.bf16.msra.mxu0 0
    %1612 = vmatprep.subr.bf16.mxu0 0
    %1613 = vmatpush1.bf16.msra.mxu0 0
    %1614 = vmatprep.subr.bf16.mxu0 0
    %1615 = vmatpush1.bf16.msra.mxu0 0
    %1616 = vmatprep.subr.bf16.mxu0 0
    %1617 = vmatpush1.bf16.msra.mxu0 0
    %1618 = vmatprep.mubr.bf16.mxu0 0
    %1619 = vmatmul.mubr.bf16.gmra.mrb[0].mxu0 %v1584
    %v1620 = vpop.f32.mrb[0].mxu0
    %v1621 = vadd.f32 %v1545, %v1620
    %v1622 = vpop.f32.mrb[0].mxu0
    %v1623 = vpop.f32.mrb[0].mxu0
    %v1624 = vpop.f32.mrb[0].mxu0
    %1625 = vdwg.mxu0
    %1626 = vmax.xlane.f32.xlu0 %v1621
    %v1627 = vpop.xlane.xlu0 %1626
    %v1628 = vsub.f32 %v1621, %v1627
    %v1629 = vmul.f32 %v1628, 1.442695
    %v1630 = vpow.pop %v1629
    %1631 = vadd.xlane.f32.xlu0 %v1630
    %v1632 = vpop.xlane.xlu0 %1631
    %v1633 = vlog2.pop %v1632
    %v1634 = vmul.f32 %v1633, 0.6931472
    %v1635 = vsub.f32 %v1628, %v1634
    %s1636 = scalar_lea.vmem [#allocation10], 8
    %1637 = vst [vmem:[%s1636] sm:$0xff] %v1635
    // Predicated region
    $region58: #{dmsp_forward.1} parent=1 // pred_check
      _
    $region59: #{dmsp_forward.1} parent=1 // pred_check_branch
      %1639 = sbr.rel (0) target = $region61
    $region60: #{dmsp_forward.1} parent=1 // pred_region
      %s1641 = ssub.s32 256, 256
      %1642 = vsyncadd [#allocation4], %s1641
      %s1643 = sshll.u32 [#allocation10], 4
      %s1644 = int_to_ptr.vmem [resolvable:$true] %s1643
      %1649 = dma.vmem_to_hbm [thread:$0]  %s1644, 256, %s10, [#allocation4], 128, 128, 8
    $region61: #{dmsp_forward.1} parent=1 // pred_fallthru
      _
    // Predicated region
    $region62: #{dmsp_forward.1} parent=1 // pred_check
      _
    $region63: #{dmsp_forward.1} parent=1 // pred_check_branch
      %1651 = sbr.rel (0) target = $region65
    $region64: #{dmsp_forward.1} parent=1 // pred_region
      %1652 = dma.done [#allocation4], 256
    $region65: #{dmsp_forward.1} parent=1 // pred_fallthru
      _
    %1653 = vsyncpa [#allocation3], 1
    %1654 = vsyncpa [#allocation6], 1
    %1655 = vsyncpa [#allocation9], 1
    %1656 = vsyncpa [#allocation4], 1

</llo_original>
